<compile_context>
chip_gen: v6e
topology: v6e:2x2x1
jax: 0.10.0
libtpu: 0.0.40
codegen_flags: <defaults>
</compile_context>

<pallas_src>
import functools

import jax
import jax.numpy as jnp
import numpy as np
from jax.experimental import pallas as pl
from jax.experimental.pallas import tpu as pltpu

K_NEIGHBORS = 3          # self.K in CAD
TILE_N_MAX = 2048        # upper bound on rows per grid step


# ----------------------------- Pallas kernel --------------------------------
def _cad_kernel(x_ref, rhs_ref, bias_ref, score_ref, *, cd, idx_bits):
    # x_ref:     (TN, Cin+2)   bf16  CoordConv input rows (features + xx,yy)
    # rhs_ref:   (Cin+2, Cd+P) bf16  [W | 2*W@C]
    # bias_ref:  (1, Cd+P)     f32   [b | 2*b@C - sum(C**2, axis=0)]
    # score_ref: (TN, 1)       f32   anomaly score per pixel (output)
    y = jnp.dot(x_ref[...], rhs_ref[...], preferred_element_type=jnp.float32)
    y = y + bias_ref[...]
    emb = y[:, :cd]                      # (TN, Cd)  = x@W + b
    fc_m_cent = y[:, cd:]                # (TN, P)   = 2*emb@C - |C|^2 (per column)

    # |emb|^2 as an MXU mat-vec (the MXU is otherwise idle here) instead of a
    # cross-lane XLU reduction.
    sq = emb * emb                                              # VPU
    ones_col = jnp.ones((cd, 1), dtype=jnp.float32)
    feat = jnp.dot(sq, ones_col, preferred_element_type=jnp.float32)  # (TN, 1)

    dsq = jnp.maximum(feat - fc_m_cent, 0.0)                    # (TN, P) >= 0

    # Top-3 smallest with ONE reduction per pass: pack the column index into
    # the low mantissa bits (bit order == value order for non-negative f32).
    # A single f32 min per pass yields both the (<=2^-19 rel perturbed) value
    # and the winning column, which is masked to +inf for the next pass
    # (first-occurrence semantics, matching torch.topk(largest=False)).
    lo_mask = jnp.int32((1 << idx_bits) - 1)
    hi_mask = jnp.int32(~((1 << idx_bits) - 1))
    col = jax.lax.broadcasted_iota(jnp.int32, dsq.shape, 1)
    keys = pltpu.bitcast(
        (pltpu.bitcast(dsq, jnp.int32) & hi_mask) | col, jnp.float32)

    def take_min(k):
        kmin = jnp.min(k, axis=-1, keepdims=True)               # (TN, 1)
        kbits = pltpu.bitcast(kmin, jnp.int32)
        val = pltpu.bitcast(kbits & hi_mask, jnp.float32)       # squared dist
        nxt = jnp.where(col == (kbits & lo_mask), jnp.float32(jnp.inf), k)
        return val, nxt

    q0, keys = take_min(keys)
    q1, keys = take_min(keys)
    q2 = pltpu.bitcast(
        pltpu.bitcast(jnp.min(keys, axis=-1, keepdims=True), jnp.int32) & hi_mask,
        jnp.float32)

    d0 = jnp.sqrt(q0)
    d1 = jnp.sqrt(q1)
    d2 = jnp.sqrt(q2)

    # score = softmin([d0,d1,d2])[..., 0] * d0 ; d0 is the minimum -> stable.
    denom = 1.0 + jnp.exp(d0 - d1) + jnp.exp(d0 - d2)
    score_ref[...] = pl.reciprocal(denom, approx=True) * d0


def _choose_tile(n):
    # Prefer >= 4 grid steps with 256-row-aligned tiles: on v7x the "parallel"
    # grid axis is split across 2 TensorCores, and >= 2 steps per core keeps
    # per-core double-buffering alive; 256-multiples fill the MXU rows.
    t = min(TILE_N_MAX, (n // 4) // 256 * 256)
    if t >= 256:
        return t
    # Small-N fallback: 8-row-aligned, at least 2 grid steps when possible.
    return max(8, min(TILE_N_MAX, (n // 2) // 8 * 8))


def cad_pallas(x_flat_bf16, w_conv, b_conv, centroids):
    """x_flat_bf16: (N, Cin+2) bf16; w_conv: (Cin+2, Cd) f32; b_conv: (Cd,) f32;
    centroids: (Cd, P) f32.  Returns score (N, 1) f32."""
    N, Cin2 = x_flat_bf16.shape
    Cd = w_conv.shape[1]
    P = centroids.shape[1]

    # Fuse both MXU passes: y = x @ [W | 2*W@C] + [b | 2*b@C - |C|^2]
    #   y[:, :Cd] = emb ,  y[:, Cd:] = 2*emb@C - sum(C^2, axis=0)
    wc2 = 2.0 * jnp.dot(w_conv, centroids)                        # (Cin2, P)
    rhs = jnp.concatenate([w_conv, wc2], axis=1)                  # (Cin2, Cd+P)
    rhs_bf = rhs.astype(jnp.bfloat16)
    cent_sq = jnp.sum(centroids * centroids, axis=0)              # (P,)
    bias = jnp.concatenate(
        [b_conv, 2.0 * jnp.dot(b_conv, centroids) - cent_sq])
    bias = bias.reshape(1, Cd + P).astype(jnp.float32)

    tile = _choose_tile(N)
    n_pad = (-N) % tile
    if n_pad:
        x_flat_bf16 = jnp.pad(x_flat_bf16, ((0, n_pad), (0, 0)))  # bf16 pad
    Np = N + n_pad

    idx_bits = max(1, (P - 1).bit_length())   # bits needed to tag a column

    grid_spec = pltpu.PrefetchScalarGridSpec(
        num_scalar_prefetch=0,
        grid=(Np // tile,),
        in_specs=[
            pl.BlockSpec((tile, Cin2), lambda i: (i, 0)),
            pl.BlockSpec((Cin2, Cd + P), lambda i: (0, 0)),
            pl.BlockSpec((1, Cd + P), lambda i: (0, 0)),
        ],
        out_specs=pl.BlockSpec((tile, 1), lambda i: (i, 0)),
    )
    score = pl.pallas_call(
        functools.partial(_cad_kernel, cd=Cd, idx_bits=idx_bits),
        out_shape=jax.ShapeDtypeStruct((Np, 1), jnp.float32),
        grid_spec=grid_spec,
        compiler_params=pltpu.CompilerParams(
            dimension_semantics=("parallel",)),
    )(x_flat_bf16, rhs_bf, bias)
    return score[:N]


# ------------------------------- JAX glue ------------------------------------
def avg_pool3_nhwc(x):
    # F.avg_pool2d(o, 3, 1, 1) with count_include_pad=True -> window sum / 9
    s = jax.lax.reduce_window(
        x, 0.0, jax.lax.add,
        window_dimensions=(1, 3, 3, 1),
        window_strides=(1, 1, 1, 1),
        padding=[(0, 0), (1, 1), (1, 1), (0, 0)])
    return s / 9.0


def build_descriptor_input(p_nchw):
    """Pyramid (list of NCHW) -> bf16 CoordConv input rows (B*H0*W0, dim+2)."""
    feats = []
    B = p_nchw[0].shape[0]
    H0, W0 = p_nchw[0].shape[2], p_nchw[0].shape[3]
    for o in p_nchw:
        o = jnp.transpose(o, (0, 2, 3, 1))                 # NCHW -> NHWC
        o = avg_pool3_nhwc(o)
        if o.shape[1] != H0:
            o = jax.image.resize(o, (B, H0, W0, o.shape[-1]), method='bilinear')
        feats.append(o.astype(jnp.bfloat16))               # cast before concat

    # CoordConv coordinate channels in [-1, 1] (xx varies along W, yy along H).
    xs = (jnp.arange(W0, dtype=jnp.float32) / max(W0 - 1, 1)) * 2.0 - 1.0
    ys = (jnp.arange(H0, dtype=jnp.float32) / max(H0 - 1, 1)) * 2.0 - 1.0
    xx = jnp.broadcast_to(xs[None, :], (H0, W0))
    yy = jnp.broadcast_to(ys[:, None], (H0, W0))
    coords = jnp.broadcast_to(jnp.stack([xx, yy], axis=-1)[None],
                              (B, H0, W0, 2)).astype(jnp.bfloat16)

    x = jnp.concatenate(feats + [coords], axis=-1)          # (B,H0,W0,dim+2) bf16
    return x.reshape(B * H0 * W0, -1), (B, H0, W0)


def cad_forward(p_nchw, w_conv, b_conv, centroids):
    x_flat, (B, H0, W0) = build_descriptor_input(p_nchw)
    score = cad_pallas(x_flat, w_conv, b_conv, centroids)   # (N, 1)
    score_map = score.reshape(B, H0, W0)[:, None, :, :]     # b (h w) 1 -> b 1 h w
    loss = jnp.float32(0.0)                                  # eval path
    return loss, score_map


# ------------------------------ reference ------------------------------------
def reference_score(x_flat, w_conv, b_conv, centroids):
    x = x_flat.astype(jnp.float32)
    emb = x @ w_conv + b_conv[None, :]
    feat = jnp.sum(emb ** 2, axis=-1, keepdims=True)
    csq = jnp.sum(centroids ** 2, axis=0, keepdims=True)
    dist = jnp.sqrt(jnp.maximum(feat + csq - 2.0 * emb @ centroids, 0.0))
    d_sorted = jnp.sort(dist, axis=-1)[:, :K_NEIGHBORS]
    sm = jax.nn.softmax(-d_sorted, axis=-1)
    return (sm[:, 0] * d_sorted[:, 0])[:, None]


# --------------------------------- main ---------------------------------------
if __name__ == "__main__":
    key = jax.random.PRNGKey(0)
    k0, k1, k2, kw, kb, kc = jax.random.split(key, 6)

    # Small synthetic pyramid (NCHW), channels sum to dim = 64.
    B = 2
    p = [
        jax.random.normal(k0, (B, 16, 16, 16), dtype=jnp.float32),  # C=16, 16x16
        jax.random.normal(k1, (B, 16, 8, 8), dtype=jnp.float32),    # C=16,  8x8
        jax.random.normal(k2, (B, 32, 4, 4), dtype=jnp.float32),    # C=32,  4x4
    ]
    dim = 16 + 16 + 32            # 64
    gamma_d = 2
    Cd = dim // gamma_d           # 32 descriptor channels
    P = 16                        # nmb_protypes (centroids)

    # Deterministic synthetic parameters.
    w_conv = 0.05 * jax.random.normal(kw, (dim + 2, Cd), dtype=jnp.float32)
    b_conv = 0.01 * jax.random.normal(kb, (Cd,), dtype=jnp.float32)
    centroids = 0.1 * jax.random.normal(kc, (Cd, P), dtype=jnp.float32)

    loss, score_map = cad_forward(p, w_conv, b_conv, centroids)
    jax.block_until_ready(score_map)

    # Verify against a pure-JAX f32 reference on the same (bf16) inputs.
    x_flat, (Bb, H0, W0) = build_descriptor_input(p)
    score_ref = reference_score(x_flat, w_conv, b_conv, centroids)
    score_ref_map = score_ref.reshape(Bb, H0, W0)[:, None, :, :]

    assert score_map.shape == (B, 1, 16, 16)
    np.testing.assert_allclose(np.asarray(score_map), np.asarray(score_ref_map),
                               rtol=2e-2, atol=2e-2)
    print("KERNEL_OK")
</pallas_src>

<mosaic_0001>
module attributes {stable_mosaic.version = 11 : i64} {
  func.func @_cad_kernel(%arg0: i32, %arg1: memref<256x66xbf16, #tpu.memory_space<vmem>>, %arg2: memref<66x48xbf16, #tpu.memory_space<vmem>>, %arg3: memref<1x48xf32, #tpu.memory_space<vmem>>, %arg4: memref<256x1xf32, #tpu.memory_space<vmem>>) attributes {dimension_semantics = [#tpu.dimension_semantics<parallel>], iteration_bounds = array<i64: 2>, scalar_prefetch = 0 : i64, scratch_operands = 0 : i64, tpu.core_type = #tpu.core_type<tc>, window_params = [{transform_indices = @transform_0, window_bounds = array<i64: 256, 66>}, {pipeline_mode = #tpu.pipeline_mode<synchronous>, transform_indices = @transform_1, window_bounds = array<i64: 66, 48>}, {pipeline_mode = #tpu.pipeline_mode<synchronous>, transform_indices = @transform_2, window_bounds = array<i64: 1, 48>}, {transform_indices = @transform_3, window_bounds = array<i64: 256, 1>}]} {
    %c0 = arith.constant 0 : index
    %c0_0 = arith.constant 0 : index
    %0 = vector.load %arg1[%c0, %c0_0] : memref<256x66xbf16, #tpu.memory_space<vmem>>, vector<256x66xbf16>
    %c0_1 = arith.constant 0 : index
    %c0_2 = arith.constant 0 : index
    %1 = vector.load %arg2[%c0_1, %c0_2] : memref<66x48xbf16, #tpu.memory_space<vmem>>, vector<66x48xbf16>
    %cst = arith.constant dense<0.000000e+00> : vector<256x48xf32>
    %2 = tpu.matmul %0, %1, %cst {dimension_numbers = #tpu.dot_dimension_numbers<[1], [0], [0], [1], [0, 0, 1, 1], [], []>} : vector<256x66xbf16>, vector<66x48xbf16>, vector<256x48xf32> -> vector<256x48xf32>
    %c0_3 = arith.constant 0 : index
    %c0_4 = arith.constant 0 : index
    %3 = vector.load %arg3[%c0_3, %c0_4] : memref<1x48xf32, #tpu.memory_space<vmem>>, vector<1x48xf32>
    %4 = vector.broadcast %3 : vector<1x48xf32> to vector<256x48xf32>
    %5 = arith.addf %2, %4 : vector<256x48xf32>
    %6 = vector.extract_strided_slice %5 {offsets = [0, 0], sizes = [256, 32], strides = [1, 1]} : vector<256x48xf32> to vector<256x32xf32>
    %7 = vector.extract_strided_slice %5 {offsets = [0, 32], sizes = [256, 16], strides = [1, 1]} : vector<256x48xf32> to vector<256x16xf32>
    %8 = arith.mulf %6, %6 : vector<256x32xf32>
    %cst_5 = arith.constant 1.000000e+00 : f32
    %9 = vector.broadcast %cst_5 : f32 to vector<32x1xf32>
    %cst_6 = arith.constant dense<0.000000e+00> : vector<256x1xf32>
    %10 = tpu.matmul %8, %9, %cst_6 {dimension_numbers = #tpu.dot_dimension_numbers<[1], [0], [0], [1], [0, 0, 1, 1], [], []>} : vector<256x32xf32>, vector<32x1xf32>, vector<256x1xf32> -> vector<256x1xf32>
    %11 = vector.broadcast %10 : vector<256x1xf32> to vector<256x16xf32>
    %12 = arith.subf %11, %7 : vector<256x16xf32>
    %cst_7 = arith.constant 0.000000e+00 : f32
    %13 = vector.broadcast %cst_7 : f32 to vector<256x16xf32>
    %14 = arith.maximumf %12, %13 : vector<256x16xf32>
    %15 = tpu.iota {dimensions = array<i32: 1>} : vector<256x16xi32>
    %16 = tpu.bitcast %14 : vector<256x16xf32> -> vector<256x16xi32>
    %c-16_i32 = arith.constant -16 : i32
    %17 = vector.broadcast %c-16_i32 : i32 to vector<256x16xi32>
    %18 = arith.andi %16, %17 : vector<256x16xi32>
    %19 = arith.ori %18, %15 : vector<256x16xi32>
    %20 = tpu.bitcast %19 : vector<256x16xi32> -> vector<256x16xf32>
    %cst_8 = arith.constant dense<0x7F800000> : vector<256xf32>
    %21 = vector.multi_reduction <minimumf>, %20, %cst_8 [1] : vector<256x16xf32> to vector<256xf32>
    %22 = vector.shape_cast %21 : vector<256xf32> to vector<256x1xf32>
    %23 = tpu.bitcast %22 : vector<256x1xf32> -> vector<256x1xi32>
    %c-16_i32_9 = arith.constant -16 : i32
    %24 = vector.broadcast %c-16_i32_9 : i32 to vector<256x1xi32>
    %25 = arith.andi %23, %24 : vector<256x1xi32>
    %26 = tpu.bitcast %25 : vector<256x1xi32> -> vector<256x1xf32>
    %c15_i32 = arith.constant 15 : i32
    %27 = vector.broadcast %c15_i32 : i32 to vector<256x1xi32>
    %28 = arith.andi %23, %27 : vector<256x1xi32>
    %29 = vector.broadcast %28 : vector<256x1xi32> to vector<256x16xi32>
    %30 = arith.cmpi eq, %15, %29 : vector<256x16xi32>
    %cst_10 = arith.constant 0x7F800000 : f32
    %31 = vector.broadcast %cst_10 : f32 to vector<256x16xf32>
    %32 = arith.select %30, %31, %20 : vector<256x16xi1>, vector<256x16xf32>
    %cst_11 = arith.constant dense<0x7F800000> : vector<256xf32>
    %33 = vector.multi_reduction <minimumf>, %32, %cst_11 [1] : vector<256x16xf32> to vector<256xf32>
    %34 = vector.shape_cast %33 : vector<256xf32> to vector<256x1xf32>
    %35 = tpu.bitcast %34 : vector<256x1xf32> -> vector<256x1xi32>
    %c-16_i32_12 = arith.constant -16 : i32
    %36 = vector.broadcast %c-16_i32_12 : i32 to vector<256x1xi32>
    %37 = arith.andi %35, %36 : vector<256x1xi32>
    %38 = tpu.bitcast %37 : vector<256x1xi32> -> vector<256x1xf32>
    %c15_i32_13 = arith.constant 15 : i32
    %39 = vector.broadcast %c15_i32_13 : i32 to vector<256x1xi32>
    %40 = arith.andi %35, %39 : vector<256x1xi32>
    %41 = vector.broadcast %40 : vector<256x1xi32> to vector<256x16xi32>
    %42 = arith.cmpi eq, %15, %41 : vector<256x16xi32>
    %cst_14 = arith.constant 0x7F800000 : f32
    %43 = vector.broadcast %cst_14 : f32 to vector<256x16xf32>
    %44 = arith.select %42, %43, %32 : vector<256x16xi1>, vector<256x16xf32>
    %cst_15 = arith.constant dense<0x7F800000> : vector<256xf32>
    %45 = vector.multi_reduction <minimumf>, %44, %cst_15 [1] : vector<256x16xf32> to vector<256xf32>
    %46 = vector.shape_cast %45 : vector<256xf32> to vector<256x1xf32>
    %47 = tpu.bitcast %46 : vector<256x1xf32> -> vector<256x1xi32>
    %c-16_i32_16 = arith.constant -16 : i32
    %48 = vector.broadcast %c-16_i32_16 : i32 to vector<256x1xi32>
    %49 = arith.andi %47, %48 : vector<256x1xi32>
    %50 = tpu.bitcast %49 : vector<256x1xi32> -> vector<256x1xf32>
    %51 = math.sqrt %26 : vector<256x1xf32>
    %52 = math.sqrt %38 : vector<256x1xf32>
    %53 = math.sqrt %50 : vector<256x1xf32>
    %54 = arith.subf %51, %52 : vector<256x1xf32>
    %55 = math.exp %54 : vector<256x1xf32>
    %cst_17 = arith.constant 1.000000e+00 : f32
    %56 = vector.broadcast %cst_17 : f32 to vector<256x1xf32>
    %57 = arith.addf %56, %55 : vector<256x1xf32>
    %58 = arith.subf %51, %53 : vector<256x1xf32>
    %59 = math.exp %58 : vector<256x1xf32>
    %60 = arith.addf %57, %59 : vector<256x1xf32>
    %61 = tpu.reciprocal %60 {approx = true} : vector<256x1xf32> -> vector<256x1xf32>
    %62 = arith.mulf %61, %51 : vector<256x1xf32>
    %c0_18 = arith.constant 0 : index
    %c0_19 = arith.constant 0 : index
    %63 = vector.load %arg4[%c0_18, %c0_19] : memref<256x1xf32, #tpu.memory_space<vmem>>, vector<256x1xf32>
    tpu.vector_store %arg4[%c0_18, %c0_19], %62 {strides = array<i32>} : memref<256x1xf32, #tpu.memory_space<vmem>>, vector<256x1xf32>,
    return
  }
  func.func @transform_0(%arg0: i32) -> (i32, i32) {
    %c0_i32 = arith.constant 0 : i32
    %c0_i32_0 = arith.constant 0 : i32
    return %arg0, %c0_i32 : i32, i32
  }
  func.func @transform_1(%arg0: i32) -> (i32, i32) {
    %c0_i32 = arith.constant 0 : i32
    %c0_i32_0 = arith.constant 0 : i32
    %c0_i32_1 = arith.constant 0 : i32
    return %c0_i32, %c0_i32_0 : i32, i32
  }
  func.func @transform_2(%arg0: i32) -> (i32, i32) {
    %c0_i32 = arith.constant 0 : i32
    %c0_i32_0 = arith.constant 0 : i32
    %c0_i32_1 = arith.constant 0 : i32
    return %c0_i32, %c0_i32_0 : i32, i32
  }
  func.func @transform_3(%arg0: i32) -> (i32, i32) {
    %c0_i32 = arith.constant 0 : i32
    %c0_i32_0 = arith.constant 0 : i32
    return %arg0, %c0_i32 : i32, i32
  }
}

</mosaic_0001>

<llo_original>
// kernel: tpu_custom_call.1
$region0: #{tpu_custom_call.1}
  #allocation0 [shape = 'u32[]', space=smem, size = 0x4, offset = 0x4, fixed_abs, tag = 'smem constant byte address 0x4 - core index']
  #allocation1 [shape = 'u32[144,128]{1,0:T(1,128)}', space=vmem, size = 0x12000, scoped, tag = 'internal scratch']
  %s0 = inlined_call_operand.vmem [shape: bf16[512,66], index: 0, kind: input, shape index: {}]
  %s1 = inlined_call_operand.vmem [shape: bf16[66,48], index: 1, kind: input, shape index: {}]
  %s2 = inlined_call_operand.vmem [shape: f32[1,48], index: 2, kind: input, shape index: {}]
  %s3 = inlined_call_operand.vmem [shape: f32[512,1], index: 3, kind: output, shape index: {}]
  %s4 = sld [smem:[#allocation0]]
  $region45: #{tpu_custom_call.1} parent=0
    _
  %s6 = ssub.s32 1, %s4
  %s7 = scalar_select 0, %s6, %s4
  loop: start=0, step=1, limit=4
  $region2: #{tpu_custom_call.1} parent=0 // loop_pre_header
    _
  $region3: #{tpu_custom_call.1} parent=0 // loop_header
    %s9 = sphi 0, %s13
    %p10 = scmp.ge.s32.totalorder %s9, 4
    %s19 = sphi 0, %s21
    %s22 = sphi 0, %s19
    %s23 = sphi 0, %s22
    %s39 = sphi 0, %s23
    %s43 = sphi 0, %s43
    %s45 = sphi 0, %s43
    %s46 = sphi 0, %s45
    %s60 = sphi 0, %s46
    %s64 = sphi 0, %s64
    %s66 = sphi 0, %s64
    %s67 = sphi 0, %s66
    %s81 = sphi 0, %s67
    %s87 = sphi 0, %s89
    %s90 = sphi 0, %s87
    %s91 = sphi 0, %s90
    %s107 = sphi 0, %s91
  $region4: #{tpu_custom_call.1} parent=0 // loop_header_branch
    %12 = sbr.rel (%p10) target = $region8
  $region5: #{tpu_custom_call.1} parent=0 // loop_body
    %s14 = ssub.s32 %s9, 1
    %s15 = ssub.s32 %s9, 2
    %s16 = sadd.s32 %s9, 1
    %s17 = ssub.s32 %s9, %s16
    %p18 = scmp.eq.s32.totalorder %s17, 0
    %s20 = sadd.s32 %s19, 1
    %s21 = scalar_select %p18, %s19, %s20
    %p24 = pneg %p18
    %p25 = scmp.eq.s32.totalorder %s9, 1
    %p26 = por %p24, %p25
    %p27 = scmp.ne.s32.totalorder %s19, %s22
    %p28 = scmp.eq.s32.totalorder %s9, 0
    %p29 = por %p27, %p28
    %p30 = scmp.ne.s32.totalorder %s19, %s22
    %p31 = scmp.eq.s32.totalorder %s14, 1
    %p32 = por %p30, %p31
    %p33 = scmp.ne.s32.totalorder %s22, %s23
    %p34 = scmp.eq.s32.totalorder %s14, 0
    %p35 = por %p33, %p34
    %p36 = scmp.ne.s32.totalorder %s22, %s23
    %p37 = scmp.eq.s32.totalorder %s15, 1
    %p38 = por %p36, %p37
    %p40 = scmp.ne.s32.totalorder %s23, %s39
    %p41 = scmp.eq.s32.totalorder %s15, 0
    %p42 = por %p40, %p41
    %s44 = sadd.s32 %s43, 1
    %p47 = scmp.eq.s32.totalorder %s9, 1
    %p48 = scmp.ne.s32.totalorder %s43, %s45
    %p49 = scmp.eq.s32.totalorder %s9, 0
    %p50 = por %p48, %p49
    %p51 = scmp.ne.s32.totalorder %s43, %s45
    %p52 = scmp.eq.s32.totalorder %s14, 1
    %p53 = por %p51, %p52
    %p54 = scmp.ne.s32.totalorder %s45, %s46
    %p55 = scmp.eq.s32.totalorder %s14, 0
    %p56 = por %p54, %p55
    %p57 = scmp.ne.s32.totalorder %s45, %s46
    %p58 = scmp.eq.s32.totalorder %s15, 1
    %p59 = por %p57, %p58
    %p61 = scmp.ne.s32.totalorder %s46, %s60
    %p62 = scmp.eq.s32.totalorder %s15, 0
    %p63 = por %p61, %p62
    %s65 = sadd.s32 %s64, 1
    %p68 = scmp.eq.s32.totalorder %s9, 1
    %p69 = scmp.ne.s32.totalorder %s64, %s66
    %p70 = scmp.eq.s32.totalorder %s9, 0
    %p71 = por %p69, %p70
    %p72 = scmp.ne.s32.totalorder %s64, %s66
    %p73 = scmp.eq.s32.totalorder %s14, 1
    %p74 = por %p72, %p73
    %p75 = scmp.ne.s32.totalorder %s66, %s67
    %p76 = scmp.eq.s32.totalorder %s14, 0
    %p77 = por %p75, %p76
    %p78 = scmp.ne.s32.totalorder %s66, %s67
    %p79 = scmp.eq.s32.totalorder %s15, 1
    %p80 = por %p78, %p79
    %p82 = scmp.ne.s32.totalorder %s67, %s81
    %p83 = scmp.eq.s32.totalorder %s15, 0
    %p84 = por %p82, %p83
    %s85 = ssub.s32 %s9, %s16
    %p86 = scmp.eq.s32.totalorder %s85, 0
    %s88 = sadd.s32 %s87, 1
    %s89 = scalar_select %p86, %s87, %s88
    %p92 = pneg %p86
    %p93 = scmp.eq.s32.totalorder %s9, 1
    %p94 = por %p92, %p93
    %p95 = scmp.ne.s32.totalorder %s87, %s90
    %p96 = scmp.eq.s32.totalorder %s9, 0
    %p97 = por %p95, %p96
    %p98 = scmp.ne.s32.totalorder %s87, %s90
    %p99 = scmp.eq.s32.totalorder %s14, 1
    %p100 = por %p98, %p99
    %p101 = scmp.ne.s32.totalorder %s90, %s91
    %p102 = scmp.eq.s32.totalorder %s14, 0
    %p103 = por %p101, %p102
    %p104 = scmp.ne.s32.totalorder %s90, %s91
    %p105 = scmp.eq.s32.totalorder %s15, 1
    %p106 = por %p104, %p105
    %p108 = scmp.ne.s32.totalorder %s91, %s107
    %p109 = scmp.eq.s32.totalorder %s15, 0
    %p110 = por %p108, %p109
    %p111 = scmp.le.s32.totalorder 1, %s9
    %p112 = scmp.lt.s32.totalorder %s9, 3
    %p113 = pnand %p111, %p112
    %p114 = pneg %p113
    // Predicated region
    $region9: #{tpu_custom_call.1} parent=5 // pred_check
      _
    $region10: #{tpu_custom_call.1} parent=5 // pred_check_branch
      %116 = sbr.rel (%p113) target = $region12
    $region11: #{tpu_custom_call.1} parent=5 // pred_region
      %s117 = ssub.s32 %s9, 1
      // Predicated region
      $region13: #{tpu_custom_call.1} parent=11 // pred_check
        %p118 = pneg %p56
      $region14: #{tpu_custom_call.1} parent=11 // pred_check_branch
        %120 = sbr.rel (%p118) target = $region16
      $region15: #{tpu_custom_call.1} parent=11 // pred_region
        _
      $region16: #{tpu_custom_call.1} parent=11 // pred_fallthru
        _
      // Predicated region
      $region17: #{tpu_custom_call.1} parent=11 // pred_check
        %p121 = pneg %p77
      $region18: #{tpu_custom_call.1} parent=11 // pred_check_branch
        %123 = sbr.rel (%p121) target = $region20
      $region19: #{tpu_custom_call.1} parent=11 // pred_region
        _
      $region20: #{tpu_custom_call.1} parent=11 // pred_fallthru
        _
    $region12: #{tpu_custom_call.1} parent=5 // pred_fallthru
      _
    %p124 = scmp.lt.s32.totalorder %s9, 2
    // Predicated region
    $region21: #{tpu_custom_call.1} parent=5 // pred_check
      %p125 = pneg %p124
    $region22: #{tpu_custom_call.1} parent=5 // pred_check_branch
      %127 = sbr.rel (%p125) target = $region24
    $region23: #{tpu_custom_call.1} parent=5 // pred_region
      // Predicated region
      $region25: #{tpu_custom_call.1} parent=23 // pred_check
        %p128 = pneg %p29
      $region26: #{tpu_custom_call.1} parent=23 // pred_check_branch
        %130 = sbr.rel (%p128) target = $region28
      $region27: #{tpu_custom_call.1} parent=23 // pred_region
        %s131 = smul.u32 32, %s9
        %p132 = scmp.lt.s32.totalorder %s131, 63
        %s133 = scalar_select %p132, %s131, 63
        %s134 = smul.addr %s133, 4
        %s135 = scalar_lea.vmem %s0, %s134
        %s136 = smul.u32 32, %s9
      $region28: #{tpu_custom_call.1} parent=23 // pred_fallthru
        _
    $region24: #{tpu_custom_call.1} parent=5 // pred_fallthru
      _
    %p137 = scmp.le.s32.totalorder 1, %s9
    %p138 = scmp.lt.s32.totalorder %s9, 3
    %p139 = pnand %p137, %p138
    %p140 = pneg %p139
    // Predicated region
    $region29: #{tpu_custom_call.1} parent=5 // pred_check
      _
    $region30: #{tpu_custom_call.1} parent=5 // pred_check_branch
      %142 = sbr.rel (%p139) target = $region32
    $region31: #{tpu_custom_call.1} parent=5 // pred_region
      %s143 = ssub.s32 %s9, 1
      %s144 = smul.u32 32, %s14
      %p145 = scmp.lt.s32.totalorder %s144, 63
      %s146 = scalar_select %p145, %s144, 63
      %s147 = smul.addr %s146, 4
      %s148 = scalar_lea.vmem %s0, %s147
      %p149 = pneg %p35
      %p150 = pneg %p32
      %p151 = pneg %p56
      %p152 = pneg %p53
      %p153 = pneg %p77
      %p154 = pneg %p74
      %p155 = pneg %p103
      %p156 = pneg %p100
      %s157 = smul.u32 32, %s14
      %p158 = scmp.lt.s32.totalorder %s157, 63
      %s159 = scalar_select %p158, %s157, 63
      %s160 = smul.addr %s159, 8
      %s161 = scalar_lea.vmem %s3, %s160
      %s162 = smul.u32 32, %s14
      %p163 = scmp.lt.s32.totalorder %s162, 63
      %s164 = scalar_select %p163, %s162, 63
      %s165 = smul.addr %s164, 4
      %s166 = scalar_lea.vmem %s0, %s165
      %s167 = smul.u32 32, %s14
      %s168 = smul.u32 32, %s14
      %p169 = scmp.lt.s32.totalorder %s168, 63
      %s170 = scalar_select %p169, %s168, 63
      %s171 = smul.addr %s170, 8
      %s172 = scalar_lea.vmem %s3, %s171
      %s173 = smul.u32 32, %s14
      %v175 = vld [vmem:[%s166] sm:$0xf]
      %v176 = vld [vmem:[%s166 + $0x4] sm:$0xf]
      %v177 = vld [vmem:[%s166 + $0x8] sm:$0xf]
      %v178 = vld [vmem:[%s166 + $0xc] sm:$0xf]
      %v179 = vld [vmem:[%s166 + $0x10] sm:$0xf]
      %v180 = vld [vmem:[%s166 + $0x14] sm:$0xf]
      %v181 = vld [vmem:[%s166 + $0x18] sm:$0xf]
      %v182 = vld [vmem:[%s166 + $0x1c] sm:$0xf]
      %v183 = vld [vmem:[%s166 + $0x20] sm:$0xf]
      %v184 = vld [vmem:[%s166 + $0x24] sm:$0xf]
      %v185 = vld [vmem:[%s166 + $0x28] sm:$0xf]
      %v186 = vld [vmem:[%s166 + $0x2c] sm:$0xf]
      %v187 = vld [vmem:[%s166 + $0x30] sm:$0xf]
      %v188 = vld [vmem:[%s166 + $0x34] sm:$0xf]
      %v189 = vld [vmem:[%s166 + $0x38] sm:$0xf]
      %v190 = vld [vmem:[%s166 + $0x3c] sm:$0xf]
      %v191 = vld [vmem:[%s166 + $0x40] sm:$0xf]
      %v192 = vld [vmem:[%s166 + $0x44] sm:$0xf]
      %v193 = vld [vmem:[%s166 + $0x48] sm:$0xf]
      %v194 = vld [vmem:[%s166 + $0x4c] sm:$0xf]
      %v195 = vld [vmem:[%s166 + $0x50] sm:$0xf]
      %v196 = vld [vmem:[%s166 + $0x54] sm:$0xf]
      %v197 = vld [vmem:[%s166 + $0x58] sm:$0xf]
      %v198 = vld [vmem:[%s166 + $0x5c] sm:$0xf]
      %v199 = vld [vmem:[%s166 + $0x60] sm:$0xf]
      %v200 = vld [vmem:[%s166 + $0x64] sm:$0xf]
      %v201 = vld [vmem:[%s166 + $0x68] sm:$0xf]
      %v202 = vld [vmem:[%s166 + $0x6c] sm:$0xf]
      %v203 = vld [vmem:[%s166 + $0x70] sm:$0xf]
      %v204 = vld [vmem:[%s166 + $0x74] sm:$0xf]
      %v205 = vld [vmem:[%s166 + $0x78] sm:$0xf]
      %v206 = vld [vmem:[%s166 + $0x7c] sm:$0xf]
      %v207 = vld [vmem:[%s1] sm:$0xf]
      %v208 = vld [vmem:[%s1 + $0x4] sm:$0xf]
      %v209 = vld [vmem:[%s1 + $0x8] sm:$0xf]
      %v210 = vld [vmem:[%s1 + $0xc] sm:$0xf]
      %v211 = vld [vmem:[%s1 + $0x10] sm:$0xf]
      %v212 = vld [vmem:[%s1 + $0x14] sm:$0xf]
      %v213 = vld [vmem:[%s1 + $0x18] sm:$0xf]
      %v214 = vld [vmem:[%s1 + $0x1c] sm:$0xf]
      %v215 = vld [vmem:[%s1 + $0x20] sm:$0x1]
      %v216 = vld [vmem:[%s2] sm:$0x1]
      %v218 = vlaneseq
      %v219 = vshrl.u32 %v218, 7
      %v220 = vsub.s32 0, %v219
      %v221 = vrot.slane %v216, %v220
      %v255 = vunpack.c.l.b16 %v175
      %v256 = vunpack.c.l.b16 %v176
      %v257 = vunpack.c.l.b16 %v177
      %v258 = vunpack.c.l.b16 %v178
      %v259 = vunpack.c.l.b16 %v179
      %v260 = vunpack.c.l.b16 %v180
      %v261 = vunpack.c.l.b16 %v181
      %v262 = vunpack.c.l.b16 %v182
      %v263 = vunpack.c.l.b16 %v183
      %v264 = vunpack.c.l.b16 %v184
      %v265 = vunpack.c.l.b16 %v185
      %v266 = vunpack.c.l.b16 %v186
      %v267 = vunpack.c.l.b16 %v187
      %v268 = vunpack.c.l.b16 %v188
      %v269 = vunpack.c.l.b16 %v189
      %v270 = vunpack.c.l.b16 %v190
      %v271 = vunpack.c.l.b16 %v191
      %v272 = vunpack.c.l.b16 %v192
      %v273 = vunpack.c.l.b16 %v193
      %v274 = vunpack.c.l.b16 %v194
      %v275 = vunpack.c.l.b16 %v195
      %v276 = vunpack.c.l.b16 %v196
      %v277 = vunpack.c.l.b16 %v197
      %v278 = vunpack.c.l.b16 %v198
      %v279 = vunpack.c.l.b16 %v199
      %v280 = vunpack.c.l.b16 %v200
      %v281 = vunpack.c.l.b16 %v201
      %v282 = vunpack.c.l.b16 %v202
      %v283 = vunpack.c.l.b16 %v203
      %v284 = vunpack.c.l.b16 %v204
      %v285 = vunpack.c.l.b16 %v205
      %v286 = vunpack.c.l.b16 %v206
      %v287 = vpack.c.b16 %v256, %v255
      %v288 = vpack.c.b16 %v258, %v257
      %v289 = vpack.c.b16 %v260, %v259
      %v290 = vpack.c.b16 %v262, %v261
      %v291 = vpack.c.b16 %v264, %v263
      %v292 = vpack.c.b16 %v266, %v265
      %v293 = vpack.c.b16 %v268, %v267
      %v294 = vpack.c.b16 %v270, %v269
      %v295 = vpack.c.b16 %v272, %v271
      %v296 = vpack.c.b16 %v274, %v273
      %v297 = vpack.c.b16 %v276, %v275
      %v298 = vpack.c.b16 %v278, %v277
      %v299 = vpack.c.b16 %v280, %v279
      %v300 = vpack.c.b16 %v282, %v281
      %v301 = vpack.c.b16 %v284, %v283
      %v302 = vpack.c.b16 %v286, %v285
      %v312 = vunpack.c.l.b16 %v207
      %v313 = vunpack.c.l.b16 %v208
      %v314 = vunpack.c.l.b16 %v209
      %v315 = vunpack.c.l.b16 %v210
      %v316 = vunpack.c.l.b16 %v211
      %v317 = vunpack.c.l.b16 %v212
      %v318 = vunpack.c.l.b16 %v213
      %v319 = vunpack.c.l.b16 %v214
      %v320 = vunpack.c.l.b16 %v215
      %v321 = vpack.c.b16 %v313, %v312
      %v322 = vpack.c.b16 %v315, %v314
      %v323 = vpack.c.b16 %v317, %v316
      %v324 = vpack.c.b16 %v319, %v318
      %v325 = vpack.c.b16 %v320, %v320
      %vm330 = vcmask 539648
      %v332 = vsel %vm330, %v287, 0
      %v335 = vsel %vm330, %v288, 0
      %v338 = vsel %vm330, %v289, 0
      %v341 = vsel %vm330, %v290, 0
      %v344 = vsel %vm330, %v291, 0
      %v347 = vsel %vm330, %v292, 0
      %v350 = vsel %vm330, %v293, 0
      %v353 = vsel %vm330, %v294, 0
      %v356 = vsel %vm330, %v295, 0
      %v359 = vsel %vm330, %v296, 0
      %v362 = vsel %vm330, %v297, 0
      %v365 = vsel %vm330, %v298, 0
      %v368 = vsel %vm330, %v299, 0
      %v371 = vsel %vm330, %v300, 0
      %v374 = vsel %vm330, %v301, 0
      %v377 = vsel %vm330, %v302, 0
      %vm379 = vcmask 1040384
      %v381 = vsel %vm379, %v325, 0
      %383 = vmatprep.subr.bf16.mxu0 0
      %384 = vmatpush1.bf16.msra.mxu0 0
      %385 = vmatprep.subr.bf16.mxu0 0
      %386 = vmatpush1.bf16.msra.mxu0 0
      %387 = vmatprep.subr.bf16.mxu0 0
      %388 = vmatpush1.bf16.msra.mxu0 0
      %389 = vmatprep.subr.bf16.mxu0 0
      %390 = vmatpush1.bf16.msra.mxu0 %v381
      %391 = vmatprep.subr.bf16.mxu0 0
      %392 = vmatpush1.bf16.msra.mxu0 %v324
      %393 = vmatprep.subr.bf16.mxu0 0
      %394 = vmatpush1.bf16.msra.mxu0 %v323
      %395 = vmatprep.subr.bf16.mxu0 0
      %396 = vmatpush1.bf16.msra.mxu0 %v322
      %397 = vmatprep.subr.bf16.mxu0 0
      %398 = vmatpush1.bf16.msra.mxu0 %v321
      %399 = vmatprep.subr.bf16.mxu0 0
      %400 = vmatpush2.bf16.msra.mxu0 0
      %401 = vmatprep.subr.bf16.mxu0 0
      %402 = vmatpush2.bf16.msra.mxu0 0
      %403 = vmatprep.subr.bf16.mxu0 0
      %404 = vmatpush2.bf16.msra.mxu0 0
      %405 = vmatprep.subr.bf16.mxu0 0
      %406 = vmatpush2.bf16.msra.mxu0 0
      %407 = vmatprep.subr.bf16.mxu0 0
      %408 = vmatpush2.bf16.msra.mxu0 0
      %409 = vmatprep.subr.bf16.mxu0 0
      %410 = vmatpush2.bf16.msra.mxu0 0
      %411 = vmatprep.subr.bf16.mxu0 0
      %412 = vmatpush2.bf16.msra.mxu0 0
      %413 = vmatprep.subr.bf16.mxu0 0
      %414 = vmatpush2.bf16.msra.mxu0 0
      %415 = vmatprep.mubr.bf16.mxu0 0
      %416 = vmatmul.mubr.bf16.gmra.mxu0 %v332
      %v417 = vpop.f32.mrf.mxu0
      %v418 = vadd.f32 %v221, %v417
      %v419 = vpop.f32.mrf.mxu0
      %v420 = vpop.f32.mrf.mxu0
      %v421 = vadd.f32 %v221, %v420
      %v422 = vpop.f32.mrf.mxu0
      %423 = vmatprep.mubr.bf16.mxu0 0
      %424 = vmatmul.mubr.bf16.gmra.mxu0 %v335
      %v425 = vpop.f32.mrf.mxu0
      %v426 = vadd.f32 %v221, %v425
      %v427 = vpop.f32.mrf.mxu0
      %v428 = vpop.f32.mrf.mxu0
      %v429 = vadd.f32 %v221, %v428
      %v430 = vpop.f32.mrf.mxu0
      %431 = vmatprep.mubr.bf16.mxu0 0
      %432 = vmatmul.mubr.bf16.gmra.mxu0 %v338
      %v433 = vpop.f32.mrf.mxu0
      %v434 = vadd.f32 %v221, %v433
      %v435 = vpop.f32.mrf.mxu0
      %v436 = vpop.f32.mrf.mxu0
      %v437 = vadd.f32 %v221, %v436
      %v438 = vpop.f32.mrf.mxu0
      %439 = vmatprep.mubr.bf16.mxu0 0
      %440 = vmatmul.mubr.bf16.gmra.mxu0 %v341
      %v441 = vpop.f32.mrf.mxu0
      %v442 = vadd.f32 %v221, %v441
      %v443 = vpop.f32.mrf.mxu0
      %v444 = vpop.f32.mrf.mxu0
      %v445 = vadd.f32 %v221, %v444
      %v446 = vpop.f32.mrf.mxu0
      %447 = vmatprep.mubr.bf16.mxu0 0
      %448 = vmatmul.mubr.bf16.gmra.mxu0 %v344
      %v449 = vpop.f32.mrf.mxu0
      %v450 = vadd.f32 %v221, %v449
      %v451 = vpop.f32.mrf.mxu0
      %v452 = vpop.f32.mrf.mxu0
      %v453 = vadd.f32 %v221, %v452
      %v454 = vpop.f32.mrf.mxu0
      %455 = vmatprep.mubr.bf16.mxu0 0
      %456 = vmatmul.mubr.bf16.gmra.mxu0 %v347
      %v457 = vpop.f32.mrf.mxu0
      %v458 = vadd.f32 %v221, %v457
      %v459 = vpop.f32.mrf.mxu0
      %v460 = vpop.f32.mrf.mxu0
      %v461 = vadd.f32 %v221, %v460
      %v462 = vpop.f32.mrf.mxu0
      %463 = vmatprep.mubr.bf16.mxu0 0
      %464 = vmatmul.mubr.bf16.gmra.mxu0 %v350
      %v465 = vpop.f32.mrf.mxu0
      %v466 = vadd.f32 %v221, %v465
      %v467 = vpop.f32.mrf.mxu0
      %v468 = vpop.f32.mrf.mxu0
      %v469 = vadd.f32 %v221, %v468
      %v470 = vpop.f32.mrf.mxu0
      %471 = vmatprep.mubr.bf16.mxu0 0
      %472 = vmatmul.mubr.bf16.gmra.mxu0 %v353
      %v473 = vpop.f32.mrf.mxu0
      %v474 = vadd.f32 %v221, %v473
      %v475 = vpop.f32.mrf.mxu0
      %v476 = vpop.f32.mrf.mxu0
      %v477 = vadd.f32 %v221, %v476
      %v478 = vpop.f32.mrf.mxu0
      %479 = vmatprep.mubr.bf16.mxu0 0
      %480 = vmatmul.mubr.bf16.gmra.mxu0 %v356
      %v481 = vpop.f32.mrf.mxu0
      %v482 = vadd.f32 %v221, %v481
      %v483 = vpop.f32.mrf.mxu0
      %v484 = vpop.f32.mrf.mxu0
      %v485 = vadd.f32 %v221, %v484
      %v486 = vpop.f32.mrf.mxu0
      %487 = vmatprep.mubr.bf16.mxu0 0
      %488 = vmatmul.mubr.bf16.gmra.mxu0 %v359
      %v489 = vpop.f32.mrf.mxu0
      %v490 = vadd.f32 %v221, %v489
      %v491 = vpop.f32.mrf.mxu0
      %v492 = vpop.f32.mrf.mxu0
      %v493 = vadd.f32 %v221, %v492
      %v494 = vpop.f32.mrf.mxu0
      %495 = vmatprep.mubr.bf16.mxu0 0
      %496 = vmatmul.mubr.bf16.gmra.mxu0 %v362
      %v497 = vpop.f32.mrf.mxu0
      %v498 = vadd.f32 %v221, %v497
      %v499 = vpop.f32.mrf.mxu0
      %v500 = vpop.f32.mrf.mxu0
      %v501 = vadd.f32 %v221, %v500
      %v502 = vpop.f32.mrf.mxu0
      %503 = vmatprep.mubr.bf16.mxu0 0
      %504 = vmatmul.mubr.bf16.gmra.mxu0 %v365
      %v505 = vpop.f32.mrf.mxu0
      %v506 = vadd.f32 %v221, %v505
      %v507 = vpop.f32.mrf.mxu0
      %v508 = vpop.f32.mrf.mxu0
      %v509 = vadd.f32 %v221, %v508
      %v510 = vpop.f32.mrf.mxu0
      %511 = vmatprep.mubr.bf16.mxu0 0
      %512 = vmatmul.mubr.bf16.gmra.mxu0 %v368
      %v513 = vpop.f32.mrf.mxu0
      %v514 = vadd.f32 %v221, %v513
      %v515 = vpop.f32.mrf.mxu0
      %v516 = vpop.f32.mrf.mxu0
      %v517 = vadd.f32 %v221, %v516
      %v518 = vpop.f32.mrf.mxu0
      %519 = vmatprep.mubr.bf16.mxu0 0
      %520 = vmatmul.mubr.bf16.gmra.mxu0 %v371
      %v521 = vpop.f32.mrf.mxu0
      %v522 = vadd.f32 %v221, %v521
      %v523 = vpop.f32.mrf.mxu0
      %v524 = vpop.f32.mrf.mxu0
      %v525 = vadd.f32 %v221, %v524
      %v526 = vpop.f32.mrf.mxu0
      %527 = vmatprep.mubr.bf16.mxu0 0
      %528 = vmatmul.mubr.bf16.gmra.mxu0 %v374
      %v529 = vpop.f32.mrf.mxu0
      %v530 = vadd.f32 %v221, %v529
      %v531 = vpop.f32.mrf.mxu0
      %v532 = vpop.f32.mrf.mxu0
      %v533 = vadd.f32 %v221, %v532
      %v534 = vpop.f32.mrf.mxu0
      %535 = vmatprep.mubr.bf16.mxu0 0
      %536 = vmatmul.mubr.bf16.gmra.mxu0 %v377
      %v537 = vpop.f32.mrf.mxu0
      %v538 = vadd.f32 %v221, %v537
      %v539 = vpop.f32.mrf.mxu0
      %v540 = vpop.f32.mrf.mxu0
      %v541 = vadd.f32 %v221, %v540
      %v542 = vpop.f32.mrf.mxu0
      %543 = vdwg.mxu0
      %v544 = vmul.f32 %v418, %v418
      %v545 = vmul.f32 %v421, %v421
      %v546 = vmul.f32 %v426, %v426
      %v547 = vmul.f32 %v429, %v429
      %v548 = vmul.f32 %v434, %v434
      %v549 = vmul.f32 %v437, %v437
      %v550 = vmul.f32 %v442, %v442
      %v551 = vmul.f32 %v445, %v445
      %v552 = vmul.f32 %v450, %v450
      %v553 = vmul.f32 %v453, %v453
      %v554 = vmul.f32 %v458, %v458
      %v555 = vmul.f32 %v461, %v461
      %v556 = vmul.f32 %v466, %v466
      %v557 = vmul.f32 %v469, %v469
      %v558 = vmul.f32 %v474, %v474
      %v559 = vmul.f32 %v477, %v477
      %v560 = vmul.f32 %v482, %v482
      %v561 = vmul.f32 %v485, %v485
      %v562 = vmul.f32 %v490, %v490
      %v563 = vmul.f32 %v493, %v493
      %v564 = vmul.f32 %v498, %v498
      %v565 = vmul.f32 %v501, %v501
      %v566 = vmul.f32 %v506, %v506
      %v567 = vmul.f32 %v509, %v509
      %v568 = vmul.f32 %v514, %v514
      %v569 = vmul.f32 %v517, %v517
      %v570 = vmul.f32 %v522, %v522
      %v571 = vmul.f32 %v525, %v525
      %v572 = vmul.f32 %v530, %v530
      %v573 = vmul.f32 %v533, %v533
      %v574 = vmul.f32 %v538, %v538
      %v575 = vmul.f32 %v541, %v541
      %vm576 = vcmask 261120
      %v578 = vsel %vm576, %v544, 0
      %v581 = vsel %vm576, %v545, 0
      %v584 = vsel %vm576, %v546, 0
      %v587 = vsel %vm576, %v547, 0
      %v590 = vsel %vm576, %v548, 0
      %v593 = vsel %vm576, %v549, 0
      %v596 = vsel %vm576, %v550, 0
      %v599 = vsel %vm576, %v551, 0
      %v602 = vsel %vm576, %v552, 0
      %v605 = vsel %vm576, %v553, 0
      %v608 = vsel %vm576, %v554, 0
      %v611 = vsel %vm576, %v555, 0
      %v614 = vsel %vm576, %v556, 0
      %v617 = vsel %vm576, %v557, 0
      %v620 = vsel %vm576, %v558, 0
      %v623 = vsel %vm576, %v559, 0
      %v626 = vsel %vm576, %v560, 0
      %v629 = vsel %vm576, %v561, 0
      %v632 = vsel %vm576, %v562, 0
      %v635 = vsel %vm576, %v563, 0
      %v638 = vsel %vm576, %v564, 0
      %v641 = vsel %vm576, %v565, 0
      %v644 = vsel %vm576, %v566, 0
      %v647 = vsel %vm576, %v567, 0
      %v650 = vsel %vm576, %v568, 0
      %v653 = vsel %vm576, %v569, 0
      %v656 = vsel %vm576, %v570, 0
      %v659 = vsel %vm576, %v571, 0
      %v662 = vsel %vm576, %v572, 0
      %v665 = vsel %vm576, %v573, 0
      %v668 = vsel %vm576, %v574, 0
      %v671 = vsel %vm576, %v575, 0
      %673 = vmatprep.subr.mxu0 0.0
      %674 = vmatpush1.msra.mxu0 0.0
      %675 = vmatprep.subr.mxu0 0.0
      %676 = vmatpush1.msra.mxu0 0.0
      %677 = vmatprep.subr.mxu0 0.0
      %678 = vmatpush1.msra.mxu0 0.0
      %679 = vmatprep.subr.mxu0 0.0
      %680 = vmatpush1.msra.mxu0 0.0
      %681 = vmatprep.subr.mxu0 0.0
      %682 = vmatpush1.msra.mxu0 0.0
      %683 = vmatprep.subr.mxu0 0.0
      %684 = vmatpush1.msra.mxu0 0.0
      %685 = vmatprep.subr.mxu0 0.0
      %686 = vmatpush1.msra.mxu0 0.0
      %687 = vmatprep.subr.mxu0 0.0
      %688 = vmatpush1.msra.mxu0 0.0
      %689 = vmatprep.subr.mxu0 0.0
      %690 = vmatpush1.msra.mxu0 0.0
      %691 = vmatprep.subr.mxu0 0.0
      %692 = vmatpush1.msra.mxu0 0.0
      %693 = vmatprep.subr.mxu0 0.0
      %694 = vmatpush1.msra.mxu0 0.0
      %695 = vmatprep.subr.mxu0 0.0
      %696 = vmatpush1.msra.mxu0 0.0
      %697 = vmatprep.subr.mxu0 0.0
      %698 = vmatpush1.msra.mxu0 1.0
      %699 = vmatprep.subr.mxu0 0.0
      %700 = vmatpush1.msra.mxu0 1.0
      %701 = vmatprep.subr.mxu0 0.0
      %702 = vmatpush1.msra.mxu0 1.0
      %703 = vmatprep.subr.mxu0 0.0
      %704 = vmatpush1.msra.mxu0 1.0
      %705 = vmatprep.subr.mxu0 0.0
      %706 = vmatpush2.msra.mxu0 0.0
      %707 = vmatprep.subr.mxu0 0.0
      %708 = vmatpush2.msra.mxu0 0.0
      %709 = vmatprep.subr.mxu0 0.0
      %710 = vmatpush2.msra.mxu0 0.0
      %711 = vmatprep.subr.mxu0 0.0
      %712 = vmatpush2.msra.mxu0 0.0
      %713 = vmatprep.subr.mxu0 0.0
      %714 = vmatpush2.msra.mxu0 0.0
      %715 = vmatprep.subr.mxu0 0.0
      %716 = vmatpush2.msra.mxu0 0.0
      %717 = vmatprep.subr.mxu0 0.0
      %718 = vmatpush2.msra.mxu0 0.0
      %719 = vmatprep.subr.mxu0 0.0
      %720 = vmatpush2.msra.mxu0 0.0
      %721 = vmatprep.subr.mxu0 0.0
      %722 = vmatpush2.msra.mxu0 0.0
      %723 = vmatprep.subr.mxu0 0.0
      %724 = vmatpush2.msra.mxu0 0.0
      %725 = vmatprep.subr.mxu0 0.0
      %726 = vmatpush2.msra.mxu0 0.0
      %727 = vmatprep.subr.mxu0 0.0
      %728 = vmatpush2.msra.mxu0 0.0
      %729 = vmatprep.subr.mxu0 0.0
      %730 = vmatpush2.msra.mxu0 0.0
      %731 = vmatprep.subr.mxu0 0.0
      %732 = vmatpush2.msra.mxu0 0.0
      %733 = vmatprep.subr.mxu0 0.0
      %734 = vmatpush2.msra.mxu0 0.0
      %735 = vmatprep.subr.mxu0 0.0
      %736 = vmatpush2.msra.mxu0 0.0
      %737 = vmatprep.mubr.f32.mxu0 0.0
      %738 = vmatmul.mubr.f32.gmra.mxu0 %v578
      %v739 = vpop.f32.mrf.mxu0
      %v740 = vadd.f32 0.0, %v739
      %v741 = vpop.f32.mrf.mxu0
      %742 = vmatprep.mubr.f32.mxu0 0.0
      %743 = vmatmul.mubr.f32.gmra.mxu0 %v581
      %v744 = vpop.f32.mrf.mxu0
      %v745 = vadd.f32 0.0, %v744
      %v746 = vpop.f32.mrf.mxu0
      %747 = vmatprep.mubr.f32.mxu0 0.0
      %748 = vmatmul.mubr.f32.gmra.mxu0 %v584
      %v749 = vpop.f32.mrf.mxu0
      %v750 = vadd.f32 0.0, %v749
      %v751 = vpop.f32.mrf.mxu0
      %752 = vmatprep.mubr.f32.mxu0 0.0
      %753 = vmatmul.mubr.f32.gmra.mxu0 %v587
      %v754 = vpop.f32.mrf.mxu0
      %v755 = vadd.f32 0.0, %v754
      %v756 = vpop.f32.mrf.mxu0
      %757 = vmatprep.mubr.f32.mxu0 0.0
      %758 = vmatmul.mubr.f32.gmra.mxu0 %v590
      %v759 = vpop.f32.mrf.mxu0
      %v760 = vadd.f32 0.0, %v759
      %v761 = vpop.f32.mrf.mxu0
      %762 = vmatprep.mubr.f32.mxu0 0.0
      %763 = vmatmul.mubr.f32.gmra.mxu0 %v593
      %v764 = vpop.f32.mrf.mxu0
      %v765 = vadd.f32 0.0, %v764
      %v766 = vpop.f32.mrf.mxu0
      %767 = vmatprep.mubr.f32.mxu0 0.0
      %768 = vmatmul.mubr.f32.gmra.mxu0 %v596
      %v769 = vpop.f32.mrf.mxu0
      %v770 = vadd.f32 0.0, %v769
      %v771 = vpop.f32.mrf.mxu0
      %772 = vmatprep.mubr.f32.mxu0 0.0
      %773 = vmatmul.mubr.f32.gmra.mxu0 %v599
      %v774 = vpop.f32.mrf.mxu0
      %v775 = vadd.f32 0.0, %v774
      %v776 = vpop.f32.mrf.mxu0
      %777 = vmatprep.mubr.f32.mxu0 0.0
      %778 = vmatmul.mubr.f32.gmra.mxu0 %v602
      %v779 = vpop.f32.mrf.mxu0
      %v780 = vadd.f32 0.0, %v779
      %v781 = vpop.f32.mrf.mxu0
      %782 = vmatprep.mubr.f32.mxu0 0.0
      %783 = vmatmul.mubr.f32.gmra.mxu0 %v605
      %v784 = vpop.f32.mrf.mxu0
      %v785 = vadd.f32 0.0, %v784
      %v786 = vpop.f32.mrf.mxu0
      %787 = vmatprep.mubr.f32.mxu0 0.0
      %788 = vmatmul.mubr.f32.gmra.mxu0 %v608
      %v789 = vpop.f32.mrf.mxu0
      %v790 = vadd.f32 0.0, %v789
      %v791 = vpop.f32.mrf.mxu0
      %792 = vmatprep.mubr.f32.mxu0 0.0
      %793 = vmatmul.mubr.f32.gmra.mxu0 %v611
      %v794 = vpop.f32.mrf.mxu0
      %v795 = vadd.f32 0.0, %v794
      %v796 = vpop.f32.mrf.mxu0
      %797 = vmatprep.mubr.f32.mxu0 0.0
      %798 = vmatmul.mubr.f32.gmra.mxu0 %v614
      %v799 = vpop.f32.mrf.mxu0
      %v800 = vadd.f32 0.0, %v799
      %v801 = vpop.f32.mrf.mxu0
      %802 = vmatprep.mubr.f32.mxu0 0.0
      %803 = vmatmul.mubr.f32.gmra.mxu0 %v617
      %v804 = vpop.f32.mrf.mxu0
      %v805 = vadd.f32 0.0, %v804
      %v806 = vpop.f32.mrf.mxu0
      %807 = vmatprep.mubr.f32.mxu0 0.0
      %808 = vmatmul.mubr.f32.gmra.mxu0 %v620
      %v809 = vpop.f32.mrf.mxu0
      %v810 = vadd.f32 0.0, %v809
      %v811 = vpop.f32.mrf.mxu0
      %812 = vmatprep.mubr.f32.mxu0 0.0
      %813 = vmatmul.mubr.f32.gmra.mxu0 %v623
      %v814 = vpop.f32.mrf.mxu0
      %v815 = vadd.f32 0.0, %v814
      %v816 = vpop.f32.mrf.mxu0
      %817 = vmatprep.mubr.f32.mxu0 0.0
      %818 = vmatmul.mubr.f32.gmra.mxu0 %v626
      %v819 = vpop.f32.mrf.mxu0
      %v820 = vadd.f32 0.0, %v819
      %v821 = vpop.f32.mrf.mxu0
      %822 = vmatprep.mubr.f32.mxu0 0.0
      %823 = vmatmul.mubr.f32.gmra.mxu0 %v629
      %v824 = vpop.f32.mrf.mxu0
      %v825 = vadd.f32 0.0, %v824
      %v826 = vpop.f32.mrf.mxu0
      %827 = vmatprep.mubr.f32.mxu0 0.0
      %828 = vmatmul.mubr.f32.gmra.mxu0 %v632
      %v829 = vpop.f32.mrf.mxu0
      %v830 = vadd.f32 0.0, %v829
      %v831 = vpop.f32.mrf.mxu0
      %832 = vmatprep.mubr.f32.mxu0 0.0
      %833 = vmatmul.mubr.f32.gmra.mxu0 %v635
      %v834 = vpop.f32.mrf.mxu0
      %v835 = vadd.f32 0.0, %v834
      %v836 = vpop.f32.mrf.mxu0
      %837 = vmatprep.mubr.f32.mxu0 0.0
      %838 = vmatmul.mubr.f32.gmra.mxu0 %v638
      %v839 = vpop.f32.mrf.mxu0
      %v840 = vadd.f32 0.0, %v839
      %v841 = vpop.f32.mrf.mxu0
      %842 = vmatprep.mubr.f32.mxu0 0.0
      %843 = vmatmul.mubr.f32.gmra.mxu0 %v641
      %v844 = vpop.f32.mrf.mxu0
      %v845 = vadd.f32 0.0, %v844
      %v846 = vpop.f32.mrf.mxu0
      %847 = vmatprep.mubr.f32.mxu0 0.0
      %848 = vmatmul.mubr.f32.gmra.mxu0 %v644
      %v849 = vpop.f32.mrf.mxu0
      %v850 = vadd.f32 0.0, %v849
      %v851 = vpop.f32.mrf.mxu0
      %852 = vmatprep.mubr.f32.mxu0 0.0
      %853 = vmatmul.mubr.f32.gmra.mxu0 %v647
      %v854 = vpop.f32.mrf.mxu0
      %v855 = vadd.f32 0.0, %v854
      %v856 = vpop.f32.mrf.mxu0
      %857 = vmatprep.mubr.f32.mxu0 0.0
      %858 = vmatmul.mubr.f32.gmra.mxu0 %v650
      %v859 = vpop.f32.mrf.mxu0
      %v860 = vadd.f32 0.0, %v859
      %v861 = vpop.f32.mrf.mxu0
      %862 = vmatprep.mubr.f32.mxu0 0.0
      %863 = vmatmul.mubr.f32.gmra.mxu0 %v653
      %v864 = vpop.f32.mrf.mxu0
      %v865 = vadd.f32 0.0, %v864
      %v866 = vpop.f32.mrf.mxu0
      %867 = vmatprep.mubr.f32.mxu0 0.0
      %868 = vmatmul.mubr.f32.gmra.mxu0 %v656
      %v869 = vpop.f32.mrf.mxu0
      %v870 = vadd.f32 0.0, %v869
      %v871 = vpop.f32.mrf.mxu0
      %872 = vmatprep.mubr.f32.mxu0 0.0
      %873 = vmatmul.mubr.f32.gmra.mxu0 %v659
      %v874 = vpop.f32.mrf.mxu0
      %v875 = vadd.f32 0.0, %v874
      %v876 = vpop.f32.mrf.mxu0
      %877 = vmatprep.mubr.f32.mxu0 0.0
      %878 = vmatmul.mubr.f32.gmra.mxu0 %v662
      %v879 = vpop.f32.mrf.mxu0
      %v880 = vadd.f32 0.0, %v879
      %v881 = vpop.f32.mrf.mxu0
      %882 = vmatprep.mubr.f32.mxu0 0.0
      %883 = vmatmul.mubr.f32.gmra.mxu0 %v665
      %v884 = vpop.f32.mrf.mxu0
      %v885 = vadd.f32 0.0, %v884
      %v886 = vpop.f32.mrf.mxu0
      %887 = vmatprep.mubr.f32.mxu0 0.0
      %888 = vmatmul.mubr.f32.gmra.mxu0 %v668
      %v889 = vpop.f32.mrf.mxu0
      %v890 = vadd.f32 0.0, %v889
      %v891 = vpop.f32.mrf.mxu0
      %892 = vmatprep.mubr.f32.mxu0 0.0
      %893 = vmatmul.mubr.f32.gmra.mxu0 %v671
      %v894 = vpop.f32.mrf.mxu0
      %v895 = vadd.f32 0.0, %v894
      %v896 = vpop.f32.mrf.mxu0
      %897 = vdwg.mxu0
      %899 = vset.pattern.permute.xlu0 0
      %900 = vperm.xlu0 %899, %v740
      %v901 = vpop.permute.xlu0 %900
      %904 = vset.pattern.permute.xlu0 0
      %905 = vperm.xlu0 %904, %v745
      %v906 = vpop.permute.xlu0 %905
      %909 = vset.pattern.permute.xlu0 0
      %910 = vperm.xlu0 %909, %v750
      %v911 = vpop.permute.xlu0 %910
      %914 = vset.pattern.permute.xlu0 0
      %915 = vperm.xlu0 %914, %v755
      %v916 = vpop.permute.xlu0 %915
      %919 = vset.pattern.permute.xlu0 0
      %920 = vperm.xlu0 %919, %v760
      %v921 = vpop.permute.xlu0 %920
      %924 = vset.pattern.permute.xlu0 0
      %925 = vperm.xlu0 %924, %v765
      %v926 = vpop.permute.xlu0 %925
      %929 = vset.pattern.permute.xlu0 0
      %930 = vperm.xlu0 %929, %v770
      %v931 = vpop.permute.xlu0 %930
      %934 = vset.pattern.permute.xlu0 0
      %935 = vperm.xlu0 %934, %v775
      %v936 = vpop.permute.xlu0 %935
      %939 = vset.pattern.permute.xlu0 0
      %940 = vperm.xlu0 %939, %v780
      %v941 = vpop.permute.xlu0 %940
      %944 = vset.pattern.permute.xlu0 0
      %945 = vperm.xlu0 %944, %v785
      %v946 = vpop.permute.xlu0 %945
      %949 = vset.pattern.permute.xlu0 0
      %950 = vperm.xlu0 %949, %v790
      %v951 = vpop.permute.xlu0 %950
      %954 = vset.pattern.permute.xlu0 0
      %955 = vperm.xlu0 %954, %v795
      %v956 = vpop.permute.xlu0 %955
      %959 = vset.pattern.permute.xlu0 0
      %960 = vperm.xlu0 %959, %v800
      %v961 = vpop.permute.xlu0 %960
      %964 = vset.pattern.permute.xlu0 0
      %965 = vperm.xlu0 %964, %v805
      %v966 = vpop.permute.xlu0 %965
      %969 = vset.pattern.permute.xlu0 0
      %970 = vperm.xlu0 %969, %v810
      %v971 = vpop.permute.xlu0 %970
      %974 = vset.pattern.permute.xlu0 0
      %975 = vperm.xlu0 %974, %v815
      %v976 = vpop.permute.xlu0 %975
      %979 = vset.pattern.permute.xlu0 0
      %980 = vperm.xlu0 %979, %v820
      %v981 = vpop.permute.xlu0 %980
      %984 = vset.pattern.permute.xlu0 0
      %985 = vperm.xlu0 %984, %v825
      %v986 = vpop.permute.xlu0 %985
      %989 = vset.pattern.permute.xlu0 0
      %990 = vperm.xlu0 %989, %v830
      %v991 = vpop.permute.xlu0 %990
      %994 = vset.pattern.permute.xlu0 0
      %995 = vperm.xlu0 %994, %v835
      %v996 = vpop.permute.xlu0 %995
      %999 = vset.pattern.permute.xlu0 0
      %1000 = vperm.xlu0 %999, %v840
      %v1001 = vpop.permute.xlu0 %1000
      %1004 = vset.pattern.permute.xlu0 0
      %1005 = vperm.xlu0 %1004, %v845
      %v1006 = vpop.permute.xlu0 %1005
      %1009 = vset.pattern.permute.xlu0 0
      %1010 = vperm.xlu0 %1009, %v850
      %v1011 = vpop.permute.xlu0 %1010
      %1014 = vset.pattern.permute.xlu0 0
      %1015 = vperm.xlu0 %1014, %v855
      %v1016 = vpop.permute.xlu0 %1015
      %1019 = vset.pattern.permute.xlu0 0
      %1020 = vperm.xlu0 %1019, %v860
      %v1021 = vpop.permute.xlu0 %1020
      %1024 = vset.pattern.permute.xlu0 0
      %1025 = vperm.xlu0 %1024, %v865
      %v1026 = vpop.permute.xlu0 %1025
      %1029 = vset.pattern.permute.xlu0 0
      %1030 = vperm.xlu0 %1029, %v870
      %v1031 = vpop.permute.xlu0 %1030
      %1034 = vset.pattern.permute.xlu0 0
      %1035 = vperm.xlu0 %1034, %v875
      %v1036 = vpop.permute.xlu0 %1035
      %1039 = vset.pattern.permute.xlu0 0
      %1040 = vperm.xlu0 %1039, %v880
      %v1041 = vpop.permute.xlu0 %1040
      %1044 = vset.pattern.permute.xlu0 0
      %1045 = vperm.xlu0 %1044, %v885
      %v1046 = vpop.permute.xlu0 %1045
      %1049 = vset.pattern.permute.xlu0 0
      %1050 = vperm.xlu0 %1049, %v890
      %v1051 = vpop.permute.xlu0 %1050
      %1054 = vset.pattern.permute.xlu0 0
      %1055 = vperm.xlu0 %1054, %v895
      %v1056 = vpop.permute.xlu0 %1055
      %v1058 = vsub.f32 %v901, %v418
      %v1059 = vsub.f32 %v906, %v421
      %v1060 = vsub.f32 %v911, %v426
      %v1061 = vsub.f32 %v916, %v429
      %v1062 = vsub.f32 %v921, %v434
      %v1063 = vsub.f32 %v926, %v437
      %v1064 = vsub.f32 %v931, %v442
      %v1065 = vsub.f32 %v936, %v445
      %v1066 = vsub.f32 %v941, %v450
      %v1067 = vsub.f32 %v946, %v453
      %v1068 = vsub.f32 %v951, %v458
      %v1069 = vsub.f32 %v956, %v461
      %v1070 = vsub.f32 %v961, %v466
      %v1071 = vsub.f32 %v966, %v469
      %v1072 = vsub.f32 %v971, %v474
      %v1073 = vsub.f32 %v976, %v477
      %v1074 = vsub.f32 %v981, %v482
      %v1075 = vsub.f32 %v986, %v485
      %v1076 = vsub.f32 %v991, %v490
      %v1077 = vsub.f32 %v996, %v493
      %v1078 = vsub.f32 %v1001, %v498
      %v1079 = vsub.f32 %v1006, %v501
      %v1080 = vsub.f32 %v1011, %v506
      %v1081 = vsub.f32 %v1016, %v509
      %v1082 = vsub.f32 %v1021, %v514
      %v1083 = vsub.f32 %v1026, %v517
      %v1084 = vsub.f32 %v1031, %v522
      %v1085 = vsub.f32 %v1036, %v525
      %v1086 = vsub.f32 %v1041, %v530
      %v1087 = vsub.f32 %v1046, %v533
      %v1088 = vsub.f32 %v1051, %v538
      %v1089 = vsub.f32 %v1056, %v541
      %v1090 = vmax.f32 %v1058, 0.0
      %v1091 = vmax.f32 %v1059, 0.0
      %v1092 = vmax.f32 %v1060, 0.0
      %v1093 = vmax.f32 %v1061, 0.0
      %v1094 = vmax.f32 %v1062, 0.0
      %v1095 = vmax.f32 %v1063, 0.0
      %v1096 = vmax.f32 %v1064, 0.0
      %v1097 = vmax.f32 %v1065, 0.0
      %v1098 = vmax.f32 %v1066, 0.0
      %v1099 = vmax.f32 %v1067, 0.0
      %v1100 = vmax.f32 %v1068, 0.0
      %v1101 = vmax.f32 %v1069, 0.0
      %v1102 = vmax.f32 %v1070, 0.0
      %v1103 = vmax.f32 %v1071, 0.0
      %v1104 = vmax.f32 %v1072, 0.0
      %v1105 = vmax.f32 %v1073, 0.0
      %v1106 = vmax.f32 %v1074, 0.0
      %v1107 = vmax.f32 %v1075, 0.0
      %v1108 = vmax.f32 %v1076, 0.0
      %v1109 = vmax.f32 %v1077, 0.0
      %v1110 = vmax.f32 %v1078, 0.0
      %v1111 = vmax.f32 %v1079, 0.0
      %v1112 = vmax.f32 %v1080, 0.0
      %v1113 = vmax.f32 %v1081, 0.0
      %v1114 = vmax.f32 %v1082, 0.0
      %v1115 = vmax.f32 %v1083, 0.0
      %v1116 = vmax.f32 %v1084, 0.0
      %v1117 = vmax.f32 %v1085, 0.0
      %v1118 = vmax.f32 %v1086, 0.0
      %v1119 = vmax.f32 %v1087, 0.0
      %v1120 = vmax.f32 %v1088, 0.0
      %v1121 = vmax.f32 %v1089, 0.0
      %v1122 = vlaneseq
      %v1123 = vand.u32 %v1122, 127
      %v1156 = vand.u32 %v1090, 4294967280
      %v1157 = vand.u32 %v1091, 4294967280
      %v1158 = vand.u32 %v1092, 4294967280
      %v1159 = vand.u32 %v1093, 4294967280
      %v1160 = vand.u32 %v1094, 4294967280
      %v1161 = vand.u32 %v1095, 4294967280
      %v1162 = vand.u32 %v1096, 4294967280
      %v1163 = vand.u32 %v1097, 4294967280
      %v1164 = vand.u32 %v1098, 4294967280
      %v1165 = vand.u32 %v1099, 4294967280
      %v1166 = vand.u32 %v1100, 4294967280
      %v1167 = vand.u32 %v1101, 4294967280
      %v1168 = vand.u32 %v1102, 4294967280
      %v1169 = vand.u32 %v1103, 4294967280
      %v1170 = vand.u32 %v1104, 4294967280
      %v1171 = vand.u32 %v1105, 4294967280
      %v1172 = vand.u32 %v1106, 4294967280
      %v1173 = vand.u32 %v1107, 4294967280
      %v1174 = vand.u32 %v1108, 4294967280
      %v1175 = vand.u32 %v1109, 4294967280
      %v1176 = vand.u32 %v1110, 4294967280
      %v1177 = vand.u32 %v1111, 4294967280
      %v1178 = vand.u32 %v1112, 4294967280
      %v1179 = vand.u32 %v1113, 4294967280
      %v1180 = vand.u32 %v1114, 4294967280
      %v1181 = vand.u32 %v1115, 4294967280
      %v1182 = vand.u32 %v1116, 4294967280
      %v1183 = vand.u32 %v1117, 4294967280
      %v1184 = vand.u32 %v1118, 4294967280
      %v1185 = vand.u32 %v1119, 4294967280
      %v1186 = vand.u32 %v1120, 4294967280
      %v1187 = vand.u32 %v1121, 4294967280
      %1188 = vrot.lane.b32.xlu0 %v1123, 32
      %v1189 = vpop.permute.xlu0 %1188
      %v1190 = vor.u32 %v1156, %v1189
      %v1191 = vor.u32 %v1157, %v1189
      %v1192 = vor.u32 %v1158, %v1189
      %v1193 = vor.u32 %v1159, %v1189
      %v1194 = vor.u32 %v1160, %v1189
      %v1195 = vor.u32 %v1161, %v1189
      %v1196 = vor.u32 %v1162, %v1189
      %v1197 = vor.u32 %v1163, %v1189
      %v1198 = vor.u32 %v1164, %v1189
      %v1199 = vor.u32 %v1165, %v1189
      %v1200 = vor.u32 %v1166, %v1189
      %v1201 = vor.u32 %v1167, %v1189
      %v1202 = vor.u32 %v1168, %v1189
      %v1203 = vor.u32 %v1169, %v1189
      %v1204 = vor.u32 %v1170, %v1189
      %v1205 = vor.u32 %v1171, %v1189
      %v1206 = vor.u32 %v1172, %v1189
      %v1207 = vor.u32 %v1173, %v1189
      %v1208 = vor.u32 %v1174, %v1189
      %v1209 = vor.u32 %v1175, %v1189
      %v1210 = vor.u32 %v1176, %v1189
      %v1211 = vor.u32 %v1177, %v1189
      %v1212 = vor.u32 %v1178, %v1189
      %v1213 = vor.u32 %v1179, %v1189
      %v1214 = vor.u32 %v1180, %v1189
      %v1215 = vor.u32 %v1181, %v1189
      %v1216 = vor.u32 %v1182, %v1189
      %v1217 = vor.u32 %v1183, %v1189
      %v1218 = vor.u32 %v1184, %v1189
      %v1219 = vor.u32 %v1185, %v1189
      %v1220 = vor.u32 %v1186, %v1189
      %v1221 = vor.u32 %v1187, %v1189
      %vm1254 = vcmask 392448
      %v1255 = vsel %vm1254, %v1190, inf
      %1256 = vmin.xlane.f32.xlu0 %v1255
      %v1257 = vpop.xlane.xlu0 %1256
      %v1258 = vsel %vm1254, %v1191, inf
      %1259 = vmin.xlane.f32.xlu0 %v1258
      %v1260 = vpop.xlane.xlu0 %1259
      %v1261 = vsel %vm1254, %v1192, inf
      %1262 = vmin.xlane.f32.xlu0 %v1261
      %v1263 = vpop.xlane.xlu0 %1262
      %v1264 = vsel %vm1254, %v1193, inf
      %1265 = vmin.xlane.f32.xlu0 %v1264
      %v1266 = vpop.xlane.xlu0 %1265
      %v1267 = vsel %vm1254, %v1194, inf
      %1268 = vmin.xlane.f32.xlu0 %v1267
      %v1269 = vpop.xlane.xlu0 %1268
      %v1270 = vsel %vm1254, %v1195, inf
      %1271 = vmin.xlane.f32.xlu0 %v1270
      %v1272 = vpop.xlane.xlu0 %1271
      %v1273 = vsel %vm1254, %v1196, inf
      %1274 = vmin.xlane.f32.xlu0 %v1273
      %v1275 = vpop.xlane.xlu0 %1274
      %v1276 = vsel %vm1254, %v1197, inf
      %1277 = vmin.xlane.f32.xlu0 %v1276
      %v1278 = vpop.xlane.xlu0 %1277
      %v1279 = vsel %vm1254, %v1198, inf
      %1280 = vmin.xlane.f32.xlu0 %v1279
      %v1281 = vpop.xlane.xlu0 %1280
      %v1282 = vsel %vm1254, %v1199, inf
      %1283 = vmin.xlane.f32.xlu0 %v1282
      %v1284 = vpop.xlane.xlu0 %1283
      %v1285 = vsel %vm1254, %v1200, inf
      %1286 = vmin.xlane.f32.xlu0 %v1285
      %v1287 = vpop.xlane.xlu0 %1286
      %v1288 = vsel %vm1254, %v1201, inf
      %1289 = vmin.xlane.f32.xlu0 %v1288
      %v1290 = vpop.xlane.xlu0 %1289
      %v1291 = vsel %vm1254, %v1202, inf
      %1292 = vmin.xlane.f32.xlu0 %v1291
      %v1293 = vpop.xlane.xlu0 %1292
      %v1294 = vsel %vm1254, %v1203, inf
      %1295 = vmin.xlane.f32.xlu0 %v1294
      %v1296 = vpop.xlane.xlu0 %1295
      %v1297 = vsel %vm1254, %v1204, inf
      %1298 = vmin.xlane.f32.xlu0 %v1297
      %v1299 = vpop.xlane.xlu0 %1298
      %v1300 = vsel %vm1254, %v1205, inf
      %1301 = vmin.xlane.f32.xlu0 %v1300
      %v1302 = vpop.xlane.xlu0 %1301
      %v1303 = vsel %vm1254, %v1206, inf
      %1304 = vmin.xlane.f32.xlu0 %v1303
      %v1305 = vpop.xlane.xlu0 %1304
      %v1306 = vsel %vm1254, %v1207, inf
      %1307 = vmin.xlane.f32.xlu0 %v1306
      %v1308 = vpop.xlane.xlu0 %1307
      %v1309 = vsel %vm1254, %v1208, inf
      %1310 = vmin.xlane.f32.xlu0 %v1309
      %v1311 = vpop.xlane.xlu0 %1310
      %v1312 = vsel %vm1254, %v1209, inf
      %1313 = vmin.xlane.f32.xlu0 %v1312
      %v1314 = vpop.xlane.xlu0 %1313
      %v1315 = vsel %vm1254, %v1210, inf
      %1316 = vmin.xlane.f32.xlu0 %v1315
      %v1317 = vpop.xlane.xlu0 %1316
      %v1318 = vsel %vm1254, %v1211, inf
      %1319 = vmin.xlane.f32.xlu0 %v1318
      %v1320 = vpop.xlane.xlu0 %1319
      %v1321 = vsel %vm1254, %v1212, inf
      %1322 = vmin.xlane.f32.xlu0 %v1321
      %v1323 = vpop.xlane.xlu0 %1322
      %v1324 = vsel %vm1254, %v1213, inf
      %1325 = vmin.xlane.f32.xlu0 %v1324
      %v1326 = vpop.xlane.xlu0 %1325
      %v1327 = vsel %vm1254, %v1214, inf
      %1328 = vmin.xlane.f32.xlu0 %v1327
      %v1329 = vpop.xlane.xlu0 %1328
      %v1330 = vsel %vm1254, %v1215, inf
      %1331 = vmin.xlane.f32.xlu0 %v1330
      %v1332 = vpop.xlane.xlu0 %1331
      %v1333 = vsel %vm1254, %v1216, inf
      %1334 = vmin.xlane.f32.xlu0 %v1333
      %v1335 = vpop.xlane.xlu0 %1334
      %v1336 = vsel %vm1254, %v1217, inf
      %1337 = vmin.xlane.f32.xlu0 %v1336
      %v1338 = vpop.xlane.xlu0 %1337
      %v1339 = vsel %vm1254, %v1218, inf
      %1340 = vmin.xlane.f32.xlu0 %v1339
      %v1341 = vpop.xlane.xlu0 %1340
      %v1342 = vsel %vm1254, %v1219, inf
      %1343 = vmin.xlane.f32.xlu0 %v1342
      %v1344 = vpop.xlane.xlu0 %1343
      %v1345 = vsel %vm1254, %v1220, inf
      %1346 = vmin.xlane.f32.xlu0 %v1345
      %v1347 = vpop.xlane.xlu0 %1346
      %v1348 = vsel %vm1254, %v1221, inf
      %1349 = vmin.xlane.f32.xlu0 %v1348
      %v1350 = vpop.xlane.xlu0 %1349
      %v1383 = vand.u32 %v1257, 4294967280
      %v1384 = vand.u32 %v1260, 4294967280
      %v1385 = vand.u32 %v1263, 4294967280
      %v1386 = vand.u32 %v1266, 4294967280
      %v1387 = vand.u32 %v1269, 4294967280
      %v1388 = vand.u32 %v1272, 4294967280
      %v1389 = vand.u32 %v1275, 4294967280
      %v1390 = vand.u32 %v1278, 4294967280
      %v1391 = vand.u32 %v1281, 4294967280
      %v1392 = vand.u32 %v1284, 4294967280
      %v1393 = vand.u32 %v1287, 4294967280
      %v1394 = vand.u32 %v1290, 4294967280
      %v1395 = vand.u32 %v1293, 4294967280
      %v1396 = vand.u32 %v1296, 4294967280
      %v1397 = vand.u32 %v1299, 4294967280
      %v1398 = vand.u32 %v1302, 4294967280
      %v1399 = vand.u32 %v1305, 4294967280
      %v1400 = vand.u32 %v1308, 4294967280
      %v1401 = vand.u32 %v1311, 4294967280
      %v1402 = vand.u32 %v1314, 4294967280
      %v1403 = vand.u32 %v1317, 4294967280
      %v1404 = vand.u32 %v1320, 4294967280
      %v1405 = vand.u32 %v1323, 4294967280
      %v1406 = vand.u32 %v1326, 4294967280
      %v1407 = vand.u32 %v1329, 4294967280
      %v1408 = vand.u32 %v1332, 4294967280
      %v1409 = vand.u32 %v1335, 4294967280
      %v1410 = vand.u32 %v1338, 4294967280
      %v1411 = vand.u32 %v1341, 4294967280
      %v1412 = vand.u32 %v1344, 4294967280
      %v1413 = vand.u32 %v1347, 4294967280
      %v1414 = vand.u32 %v1350, 4294967280
      %v1447 = vand.u32 %v1257, 15
      %v1448 = vand.u32 %v1260, 15
      %v1449 = vand.u32 %v1263, 15
      %v1450 = vand.u32 %v1266, 15
      %v1451 = vand.u32 %v1269, 15
      %v1452 = vand.u32 %v1272, 15
      %v1453 = vand.u32 %v1275, 15
      %v1454 = vand.u32 %v1278, 15
      %v1455 = vand.u32 %v1281, 15
      %v1456 = vand.u32 %v1284, 15
      %v1457 = vand.u32 %v1287, 15
      %v1458 = vand.u32 %v1290, 15
      %v1459 = vand.u32 %v1293, 15
      %v1460 = vand.u32 %v1296, 15
      %v1461 = vand.u32 %v1299, 15
      %v1462 = vand.u32 %v1302, 15
      %v1463 = vand.u32 %v1305, 15
      %v1464 = vand.u32 %v1308, 15
      %v1465 = vand.u32 %v1311, 15
      %v1466 = vand.u32 %v1314, 15
      %v1467 = vand.u32 %v1317, 15
      %v1468 = vand.u32 %v1320, 15
      %v1469 = vand.u32 %v1323, 15
      %v1470 = vand.u32 %v1326, 15
      %v1471 = vand.u32 %v1329, 15
      %v1472 = vand.u32 %v1332, 15
      %v1473 = vand.u32 %v1335, 15
      %v1474 = vand.u32 %v1338, 15
      %v1475 = vand.u32 %v1341, 15
      %v1476 = vand.u32 %v1344, 15
      %v1477 = vand.u32 %v1347, 15
      %v1478 = vand.u32 %v1350, 15
      %vm1479 = vcmp.eq.s32.totalorder %v1123, %v1447
      %vm1480 = vcmp.eq.s32.totalorder %v1123, %v1448
      %vm1481 = vcmp.eq.s32.totalorder %v1123, %v1449
      %vm1482 = vcmp.eq.s32.totalorder %v1123, %v1450
      %vm1483 = vcmp.eq.s32.totalorder %v1123, %v1451
      %vm1484 = vcmp.eq.s32.totalorder %v1123, %v1452
      %vm1485 = vcmp.eq.s32.totalorder %v1123, %v1453
      %vm1486 = vcmp.eq.s32.totalorder %v1123, %v1454
      %vm1487 = vcmp.eq.s32.totalorder %v1123, %v1455
      %vm1488 = vcmp.eq.s32.totalorder %v1123, %v1456
      %vm1489 = vcmp.eq.s32.totalorder %v1123, %v1457
      %vm1490 = vcmp.eq.s32.totalorder %v1123, %v1458
      %vm1491 = vcmp.eq.s32.totalorder %v1123, %v1459
      %vm1492 = vcmp.eq.s32.totalorder %v1123, %v1460
      %vm1493 = vcmp.eq.s32.totalorder %v1123, %v1461
      %vm1494 = vcmp.eq.s32.totalorder %v1123, %v1462
      %vm1495 = vcmp.eq.s32.totalorder %v1123, %v1463
      %vm1496 = vcmp.eq.s32.totalorder %v1123, %v1464
      %vm1497 = vcmp.eq.s32.totalorder %v1123, %v1465
      %vm1498 = vcmp.eq.s32.totalorder %v1123, %v1466
      %vm1499 = vcmp.eq.s32.totalorder %v1123, %v1467
      %vm1500 = vcmp.eq.s32.totalorder %v1123, %v1468
      %vm1501 = vcmp.eq.s32.totalorder %v1123, %v1469
      %vm1502 = vcmp.eq.s32.totalorder %v1123, %v1470
      %vm1503 = vcmp.eq.s32.totalorder %v1123, %v1471
      %vm1504 = vcmp.eq.s32.totalorder %v1123, %v1472
      %vm1505 = vcmp.eq.s32.totalorder %v1123, %v1473
      %vm1506 = vcmp.eq.s32.totalorder %v1123, %v1474
      %vm1507 = vcmp.eq.s32.totalorder %v1123, %v1475
      %vm1508 = vcmp.eq.s32.totalorder %v1123, %v1476
      %vm1509 = vcmp.eq.s32.totalorder %v1123, %v1477
      %vm1510 = vcmp.eq.s32.totalorder %v1123, %v1478
      %1511 = vrot.lane.b32.xlu0 %v1190, 96
      %v1512 = vpop.permute.xlu0 %1511
      %1513 = vrot.lane.b32.xlu0 %v1191, 96
      %v1514 = vpop.permute.xlu0 %1513
      %1515 = vrot.lane.b32.xlu0 %v1192, 96
      %v1516 = vpop.permute.xlu0 %1515
      %1517 = vrot.lane.b32.xlu0 %v1193, 96
      %v1518 = vpop.permute.xlu0 %1517
      %1519 = vrot.lane.b32.xlu0 %v1194, 96
      %v1520 = vpop.permute.xlu0 %1519
      %1521 = vrot.lane.b32.xlu0 %v1195, 96
      %v1522 = vpop.permute.xlu0 %1521
      %1523 = vrot.lane.b32.xlu0 %v1196, 96
      %v1524 = vpop.permute.xlu0 %1523
      %1525 = vrot.lane.b32.xlu0 %v1197, 96
      %v1526 = vpop.permute.xlu0 %1525
      %1527 = vrot.lane.b32.xlu0 %v1198, 96
      %v1528 = vpop.permute.xlu0 %1527
      %1529 = vrot.lane.b32.xlu0 %v1199, 96
      %v1530 = vpop.permute.xlu0 %1529
      %1531 = vrot.lane.b32.xlu0 %v1200, 96
      %v1532 = vpop.permute.xlu0 %1531
      %1533 = vrot.lane.b32.xlu0 %v1201, 96
      %v1534 = vpop.permute.xlu0 %1533
      %1535 = vrot.lane.b32.xlu0 %v1202, 96
      %v1536 = vpop.permute.xlu0 %1535
      %1537 = vrot.lane.b32.xlu0 %v1203, 96
      %v1538 = vpop.permute.xlu0 %1537
      %1539 = vrot.lane.b32.xlu0 %v1204, 96
      %v1540 = vpop.permute.xlu0 %1539
      %1541 = vrot.lane.b32.xlu0 %v1205, 96
      %v1542 = vpop.permute.xlu0 %1541
      %1543 = vrot.lane.b32.xlu0 %v1206, 96
      %v1544 = vpop.permute.xlu0 %1543
      %1545 = vrot.lane.b32.xlu0 %v1207, 96
      %v1546 = vpop.permute.xlu0 %1545
      %1547 = vrot.lane.b32.xlu0 %v1208, 96
      %v1548 = vpop.permute.xlu0 %1547
      %1549 = vrot.lane.b32.xlu0 %v1209, 96
      %v1550 = vpop.permute.xlu0 %1549
      %1551 = vrot.lane.b32.xlu0 %v1210, 96
      %v1552 = vpop.permute.xlu0 %1551
      %1553 = vrot.lane.b32.xlu0 %v1211, 96
      %v1554 = vpop.permute.xlu0 %1553
      %1555 = vrot.lane.b32.xlu0 %v1212, 96
      %v1556 = vpop.permute.xlu0 %1555
      %1557 = vrot.lane.b32.xlu0 %v1213, 96
      %v1558 = vpop.permute.xlu0 %1557
      %1559 = vrot.lane.b32.xlu0 %v1214, 96
      %v1560 = vpop.permute.xlu0 %1559
      %1561 = vrot.lane.b32.xlu0 %v1215, 96
      %v1562 = vpop.permute.xlu0 %1561
      %1563 = vrot.lane.b32.xlu0 %v1216, 96
      %v1564 = vpop.permute.xlu0 %1563
      %1565 = vrot.lane.b32.xlu0 %v1217, 96
      %v1566 = vpop.permute.xlu0 %1565
      %1567 = vrot.lane.b32.xlu0 %v1218, 96
      %v1568 = vpop.permute.xlu0 %1567
      %1569 = vrot.lane.b32.xlu0 %v1219, 96
      %v1570 = vpop.permute.xlu0 %1569
      %1571 = vrot.lane.b32.xlu0 %v1220, 96
      %v1572 = vpop.permute.xlu0 %1571
      %1573 = vrot.lane.b32.xlu0 %v1221, 96
      %v1574 = vpop.permute.xlu0 %1573
      %v1607 = vsel %vm1479, inf, %v1512
      %v1608 = vsel %vm1480, inf, %v1514
      %v1609 = vsel %vm1481, inf, %v1516
      %v1610 = vsel %vm1482, inf, %v1518
      %v1611 = vsel %vm1483, inf, %v1520
      %v1612 = vsel %vm1484, inf, %v1522
      %v1613 = vsel %vm1485, inf, %v1524
      %v1614 = vsel %vm1486, inf, %v1526
      %v1615 = vsel %vm1487, inf, %v1528
      %v1616 = vsel %vm1488, inf, %v1530
      %v1617 = vsel %vm1489, inf, %v1532
      %v1618 = vsel %vm1490, inf, %v1534
      %v1619 = vsel %vm1491, inf, %v1536
      %v1620 = vsel %vm1492, inf, %v1538
      %v1621 = vsel %vm1493, inf, %v1540
      %v1622 = vsel %vm1494, inf, %v1542
      %v1623 = vsel %vm1495, inf, %v1544
      %v1624 = vsel %vm1496, inf, %v1546
      %v1625 = vsel %vm1497, inf, %v1548
      %v1626 = vsel %vm1498, inf, %v1550
      %v1627 = vsel %vm1499, inf, %v1552
      %v1628 = vsel %vm1500, inf, %v1554
      %v1629 = vsel %vm1501, inf, %v1556
      %v1630 = vsel %vm1502, inf, %v1558
      %v1631 = vsel %vm1503, inf, %v1560
      %v1632 = vsel %vm1504, inf, %v1562
      %v1633 = vsel %vm1505, inf, %v1564
      %v1634 = vsel %vm1506, inf, %v1566
      %v1635 = vsel %vm1507, inf, %v1568
      %v1636 = vsel %vm1508, inf, %v1570
      %v1637 = vsel %vm1509, inf, %v1572
      %v1638 = vsel %vm1510, inf, %v1574
      %vm1639 = vcmask 130048
      %v1640 = vsel %vm1639, %v1607, inf
      %1641 = vmin.xlane.f32.xlu0 %v1640
      %v1642 = vpop.xlane.xlu0 %1641
      %v1643 = vsel %vm1639, %v1608, inf
      %1644 = vmin.xlane.f32.xlu0 %v1643
      %v1645 = vpop.xlane.xlu0 %1644
      %v1646 = vsel %vm1639, %v1609, inf
      %1647 = vmin.xlane.f32.xlu0 %v1646
      %v1648 = vpop.xlane.xlu0 %1647
      %v1649 = vsel %vm1639, %v1610, inf
      %1650 = vmin.xlane.f32.xlu0 %v1649
      %v1651 = vpop.xlane.xlu0 %1650
      %v1652 = vsel %vm1639, %v1611, inf
      %1653 = vmin.xlane.f32.xlu0 %v1652
      %v1654 = vpop.xlane.xlu0 %1653
      %v1655 = vsel %vm1639, %v1612, inf
      %1656 = vmin.xlane.f32.xlu0 %v1655
      %v1657 = vpop.xlane.xlu0 %1656
      %v1658 = vsel %vm1639, %v1613, inf
      %1659 = vmin.xlane.f32.xlu0 %v1658
      %v1660 = vpop.xlane.xlu0 %1659
      %v1661 = vsel %vm1639, %v1614, inf
      %1662 = vmin.xlane.f32.xlu0 %v1661
      %v1663 = vpop.xlane.xlu0 %1662
      %v1664 = vsel %vm1639, %v1615, inf
      %1665 = vmin.xlane.f32.xlu0 %v1664
      %v1666 = vpop.xlane.xlu0 %1665
      %v1667 = vsel %vm1639, %v1616, inf
      %1668 = vmin.xlane.f32.xlu0 %v1667
      %v1669 = vpop.xlane.xlu0 %1668
      %v1670 = vsel %vm1639, %v1617, inf
      %1671 = vmin.xlane.f32.xlu0 %v1670
      %v1672 = vpop.xlane.xlu0 %1671
      %v1673 = vsel %vm1639, %v1618, inf
      %1674 = vmin.xlane.f32.xlu0 %v1673
      %v1675 = vpop.xlane.xlu0 %1674
      %v1676 = vsel %vm1639, %v1619, inf
      %1677 = vmin.xlane.f32.xlu0 %v1676
      %v1678 = vpop.xlane.xlu0 %1677
      %v1679 = vsel %vm1639, %v1620, inf
      %1680 = vmin.xlane.f32.xlu0 %v1679
      %v1681 = vpop.xlane.xlu0 %1680
      %v1682 = vsel %vm1639, %v1621, inf
      %1683 = vmin.xlane.f32.xlu0 %v1682
      %v1684 = vpop.xlane.xlu0 %1683
      %v1685 = vsel %vm1639, %v1622, inf
      %1686 = vmin.xlane.f32.xlu0 %v1685
      %v1687 = vpop.xlane.xlu0 %1686
      %v1688 = vsel %vm1639, %v1623, inf
      %1689 = vmin.xlane.f32.xlu0 %v1688
      %v1690 = vpop.xlane.xlu0 %1689
      %v1691 = vsel %vm1639, %v1624, inf
      %1692 = vmin.xlane.f32.xlu0 %v1691
      %v1693 = vpop.xlane.xlu0 %1692
      %v1694 = vsel %vm1639, %v1625, inf
      %1695 = vmin.xlane.f32.xlu0 %v1694
      %v1696 = vpop.xlane.xlu0 %1695
      %v1697 = vsel %vm1639, %v1626, inf
      %1698 = vmin.xlane.f32.xlu0 %v1697
      %v1699 = vpop.xlane.xlu0 %1698
      %v1700 = vsel %vm1639, %v1627, inf
      %1701 = vmin.xlane.f32.xlu0 %v1700
      %v1702 = vpop.xlane.xlu0 %1701
      %v1703 = vsel %vm1639, %v1628, inf
      %1704 = vmin.xlane.f32.xlu0 %v1703
      %v1705 = vpop.xlane.xlu0 %1704
      %v1706 = vsel %vm1639, %v1629, inf
      %1707 = vmin.xlane.f32.xlu0 %v1706
      %v1708 = vpop.xlane.xlu0 %1707
      %v1709 = vsel %vm1639, %v1630, inf
      %1710 = vmin.xlane.f32.xlu0 %v1709
      %v1711 = vpop.xlane.xlu0 %1710
      %v1712 = vsel %vm1639, %v1631, inf
      %1713 = vmin.xlane.f32.xlu0 %v1712
      %v1714 = vpop.xlane.xlu0 %1713
      %v1715 = vsel %vm1639, %v1632, inf
      %1716 = vmin.xlane.f32.xlu0 %v1715
      %v1717 = vpop.xlane.xlu0 %1716
      %v1718 = vsel %vm1639, %v1633, inf
      %1719 = vmin.xlane.f32.xlu0 %v1718
      %v1720 = vpop.xlane.xlu0 %1719
      %v1721 = vsel %vm1639, %v1634, inf
      %1722 = vmin.xlane.f32.xlu0 %v1721
      %v1723 = vpop.xlane.xlu0 %1722
      %v1724 = vsel %vm1639, %v1635, inf
      %1725 = vmin.xlane.f32.xlu0 %v1724
      %v1726 = vpop.xlane.xlu0 %1725
      %v1727 = vsel %vm1639, %v1636, inf
      %1728 = vmin.xlane.f32.xlu0 %v1727
      %v1729 = vpop.xlane.xlu0 %1728
      %v1730 = vsel %vm1639, %v1637, inf
      %1731 = vmin.xlane.f32.xlu0 %v1730
      %v1732 = vpop.xlane.xlu0 %1731
      %v1733 = vsel %vm1639, %v1638, inf
      %1734 = vmin.xlane.f32.xlu0 %v1733
      %v1735 = vpop.xlane.xlu0 %1734
      %v1768 = vand.u32 %v1642, 4294967280
      %v1769 = vand.u32 %v1645, 4294967280
      %v1770 = vand.u32 %v1648, 4294967280
      %v1771 = vand.u32 %v1651, 4294967280
      %v1772 = vand.u32 %v1654, 4294967280
      %v1773 = vand.u32 %v1657, 4294967280
      %v1774 = vand.u32 %v1660, 4294967280
      %v1775 = vand.u32 %v1663, 4294967280
      %v1776 = vand.u32 %v1666, 4294967280
      %v1777 = vand.u32 %v1669, 4294967280
      %v1778 = vand.u32 %v1672, 4294967280
      %v1779 = vand.u32 %v1675, 4294967280
      %v1780 = vand.u32 %v1678, 4294967280
      %v1781 = vand.u32 %v1681, 4294967280
      %v1782 = vand.u32 %v1684, 4294967280
      %v1783 = vand.u32 %v1687, 4294967280
      %v1784 = vand.u32 %v1690, 4294967280
      %v1785 = vand.u32 %v1693, 4294967280
      %v1786 = vand.u32 %v1696, 4294967280
      %v1787 = vand.u32 %v1699, 4294967280
      %v1788 = vand.u32 %v1702, 4294967280
      %v1789 = vand.u32 %v1705, 4294967280
      %v1790 = vand.u32 %v1708, 4294967280
      %v1791 = vand.u32 %v1711, 4294967280
      %v1792 = vand.u32 %v1714, 4294967280
      %v1793 = vand.u32 %v1717, 4294967280
      %v1794 = vand.u32 %v1720, 4294967280
      %v1795 = vand.u32 %v1723, 4294967280
      %v1796 = vand.u32 %v1726, 4294967280
      %v1797 = vand.u32 %v1729, 4294967280
      %v1798 = vand.u32 %v1732, 4294967280
      %v1799 = vand.u32 %v1735, 4294967280
      %v1832 = vand.u32 %v1642, 15
      %v1833 = vand.u32 %v1645, 15
      %v1834 = vand.u32 %v1648, 15
      %v1835 = vand.u32 %v1651, 15
      %v1836 = vand.u32 %v1654, 15
      %v1837 = vand.u32 %v1657, 15
      %v1838 = vand.u32 %v1660, 15
      %v1839 = vand.u32 %v1663, 15
      %v1840 = vand.u32 %v1666, 15
      %v1841 = vand.u32 %v1669, 15
      %v1842 = vand.u32 %v1672, 15
      %v1843 = vand.u32 %v1675, 15
      %v1844 = vand.u32 %v1678, 15
      %v1845 = vand.u32 %v1681, 15
      %v1846 = vand.u32 %v1684, 15
      %v1847 = vand.u32 %v1687, 15
      %v1848 = vand.u32 %v1690, 15
      %v1849 = vand.u32 %v1693, 15
      %v1850 = vand.u32 %v1696, 15
      %v1851 = vand.u32 %v1699, 15
      %v1852 = vand.u32 %v1702, 15
      %v1853 = vand.u32 %v1705, 15
      %v1854 = vand.u32 %v1708, 15
      %v1855 = vand.u32 %v1711, 15
      %v1856 = vand.u32 %v1714, 15
      %v1857 = vand.u32 %v1717, 15
      %v1858 = vand.u32 %v1720, 15
      %v1859 = vand.u32 %v1723, 15
      %v1860 = vand.u32 %v1726, 15
      %v1861 = vand.u32 %v1729, 15
      %v1862 = vand.u32 %v1732, 15
      %v1863 = vand.u32 %v1735, 15
      %vm1864 = vcmp.eq.s32.totalorder %v1123, %v1832
      %vm1865 = vcmp.eq.s32.totalorder %v1123, %v1833
      %vm1866 = vcmp.eq.s32.totalorder %v1123, %v1834
      %vm1867 = vcmp.eq.s32.totalorder %v1123, %v1835
      %vm1868 = vcmp.eq.s32.totalorder %v1123, %v1836
      %vm1869 = vcmp.eq.s32.totalorder %v1123, %v1837
      %vm1870 = vcmp.eq.s32.totalorder %v1123, %v1838
      %vm1871 = vcmp.eq.s32.totalorder %v1123, %v1839
      %vm1872 = vcmp.eq.s32.totalorder %v1123, %v1840
      %vm1873 = vcmp.eq.s32.totalorder %v1123, %v1841
      %vm1874 = vcmp.eq.s32.totalorder %v1123, %v1842
      %vm1875 = vcmp.eq.s32.totalorder %v1123, %v1843
      %vm1876 = vcmp.eq.s32.totalorder %v1123, %v1844
      %vm1877 = vcmp.eq.s32.totalorder %v1123, %v1845
      %vm1878 = vcmp.eq.s32.totalorder %v1123, %v1846
      %vm1879 = vcmp.eq.s32.totalorder %v1123, %v1847
      %vm1880 = vcmp.eq.s32.totalorder %v1123, %v1848
      %vm1881 = vcmp.eq.s32.totalorder %v1123, %v1849
      %vm1882 = vcmp.eq.s32.totalorder %v1123, %v1850
      %vm1883 = vcmp.eq.s32.totalorder %v1123, %v1851
      %vm1884 = vcmp.eq.s32.totalorder %v1123, %v1852
      %vm1885 = vcmp.eq.s32.totalorder %v1123, %v1853
      %vm1886 = vcmp.eq.s32.totalorder %v1123, %v1854
      %vm1887 = vcmp.eq.s32.totalorder %v1123, %v1855
      %vm1888 = vcmp.eq.s32.totalorder %v1123, %v1856
      %vm1889 = vcmp.eq.s32.totalorder %v1123, %v1857
      %vm1890 = vcmp.eq.s32.totalorder %v1123, %v1858
      %vm1891 = vcmp.eq.s32.totalorder %v1123, %v1859
      %vm1892 = vcmp.eq.s32.totalorder %v1123, %v1860
      %vm1893 = vcmp.eq.s32.totalorder %v1123, %v1861
      %vm1894 = vcmp.eq.s32.totalorder %v1123, %v1862
      %vm1895 = vcmp.eq.s32.totalorder %v1123, %v1863
      %v1896 = vsel %vm1864, inf, %v1607
      %v1897 = vsel %vm1865, inf, %v1608
      %v1898 = vsel %vm1866, inf, %v1609
      %v1899 = vsel %vm1867, inf, %v1610
      %v1900 = vsel %vm1868, inf, %v1611
      %v1901 = vsel %vm1869, inf, %v1612
      %v1902 = vsel %vm1870, inf, %v1613
      %v1903 = vsel %vm1871, inf, %v1614
      %v1904 = vsel %vm1872, inf, %v1615
      %v1905 = vsel %vm1873, inf, %v1616
      %v1906 = vsel %vm1874, inf, %v1617
      %v1907 = vsel %vm1875, inf, %v1618
      %v1908 = vsel %vm1876, inf, %v1619
      %v1909 = vsel %vm1877, inf, %v1620
      %v1910 = vsel %vm1878, inf, %v1621
      %v1911 = vsel %vm1879, inf, %v1622
      %v1912 = vsel %vm1880, inf, %v1623
      %v1913 = vsel %vm1881, inf, %v1624
      %v1914 = vsel %vm1882, inf, %v1625
      %v1915 = vsel %vm1883, inf, %v1626
      %v1916 = vsel %vm1884, inf, %v1627
      %v1917 = vsel %vm1885, inf, %v1628
      %v1918 = vsel %vm1886, inf, %v1629
      %v1919 = vsel %vm1887, inf, %v1630
      %v1920 = vsel %vm1888, inf, %v1631
      %v1921 = vsel %vm1889, inf, %v1632
      %v1922 = vsel %vm1890, inf, %v1633
      %v1923 = vsel %vm1891, inf, %v1634
      %v1924 = vsel %vm1892, inf, %v1635
      %v1925 = vsel %vm1893, inf, %v1636
      %v1926 = vsel %vm1894, inf, %v1637
      %v1927 = vsel %vm1895, inf, %v1638
      %v1928 = vsel %vm1639, %v1896, inf
      %1929 = vmin.xlane.f32.xlu0 %v1928
      %v1930 = vpop.xlane.xlu0 %1929
      %v1931 = vsel %vm1639, %v1897, inf
      %1932 = vmin.xlane.f32.xlu0 %v1931
      %v1933 = vpop.xlane.xlu0 %1932
      %v1934 = vsel %vm1639, %v1898, inf
      %1935 = vmin.xlane.f32.xlu0 %v1934
      %v1936 = vpop.xlane.xlu0 %1935
      %v1937 = vsel %vm1639, %v1899, inf
      %1938 = vmin.xlane.f32.xlu0 %v1937
      %v1939 = vpop.xlane.xlu0 %1938
      %v1940 = vsel %vm1639, %v1900, inf
      %1941 = vmin.xlane.f32.xlu0 %v1940
      %v1942 = vpop.xlane.xlu0 %1941
      %v1943 = vsel %vm1639, %v1901, inf
      %1944 = vmin.xlane.f32.xlu0 %v1943
      %v1945 = vpop.xlane.xlu0 %1944
      %v1946 = vsel %vm1639, %v1902, inf
      %1947 = vmin.xlane.f32.xlu0 %v1946
      %v1948 = vpop.xlane.xlu0 %1947
      %v1949 = vsel %vm1639, %v1903, inf
      %1950 = vmin.xlane.f32.xlu0 %v1949
      %v1951 = vpop.xlane.xlu0 %1950
      %v1952 = vsel %vm1639, %v1904, inf
      %1953 = vmin.xlane.f32.xlu0 %v1952
      %v1954 = vpop.xlane.xlu0 %1953
      %v1955 = vsel %vm1639, %v1905, inf
      %1956 = vmin.xlane.f32.xlu0 %v1955
      %v1957 = vpop.xlane.xlu0 %1956
      %v1958 = vsel %vm1639, %v1906, inf
      %1959 = vmin.xlane.f32.xlu0 %v1958
      %v1960 = vpop.xlane.xlu0 %1959
      %v1961 = vsel %vm1639, %v1907, inf
      %1962 = vmin.xlane.f32.xlu0 %v1961
      %v1963 = vpop.xlane.xlu0 %1962
      %v1964 = vsel %vm1639, %v1908, inf
      %1965 = vmin.xlane.f32.xlu0 %v1964
      %v1966 = vpop.xlane.xlu0 %1965
      %v1967 = vsel %vm1639, %v1909, inf
      %1968 = vmin.xlane.f32.xlu0 %v1967
      %v1969 = vpop.xlane.xlu0 %1968
      %v1970 = vsel %vm1639, %v1910, inf
      %1971 = vmin.xlane.f32.xlu0 %v1970
      %v1972 = vpop.xlane.xlu0 %1971
      %v1973 = vsel %vm1639, %v1911, inf
      %1974 = vmin.xlane.f32.xlu0 %v1973
      %v1975 = vpop.xlane.xlu0 %1974
      %v1976 = vsel %vm1639, %v1912, inf
      %1977 = vmin.xlane.f32.xlu0 %v1976
      %v1978 = vpop.xlane.xlu0 %1977
      %v1979 = vsel %vm1639, %v1913, inf
      %1980 = vmin.xlane.f32.xlu0 %v1979
      %v1981 = vpop.xlane.xlu0 %1980
      %v1982 = vsel %vm1639, %v1914, inf
      %1983 = vmin.xlane.f32.xlu0 %v1982
      %v1984 = vpop.xlane.xlu0 %1983
      %v1985 = vsel %vm1639, %v1915, inf
      %1986 = vmin.xlane.f32.xlu0 %v1985
      %v1987 = vpop.xlane.xlu0 %1986
      %v1988 = vsel %vm1639, %v1916, inf
      %1989 = vmin.xlane.f32.xlu0 %v1988
      %v1990 = vpop.xlane.xlu0 %1989
      %v1991 = vsel %vm1639, %v1917, inf
      %1992 = vmin.xlane.f32.xlu0 %v1991
      %v1993 = vpop.xlane.xlu0 %1992
      %v1994 = vsel %vm1639, %v1918, inf
      %1995 = vmin.xlane.f32.xlu0 %v1994
      %v1996 = vpop.xlane.xlu0 %1995
      %v1997 = vsel %vm1639, %v1919, inf
      %1998 = vmin.xlane.f32.xlu0 %v1997
      %v1999 = vpop.xlane.xlu0 %1998
      %v2000 = vsel %vm1639, %v1920, inf
      %2001 = vmin.xlane.f32.xlu0 %v2000
      %v2002 = vpop.xlane.xlu0 %2001
      %v2003 = vsel %vm1639, %v1921, inf
      %2004 = vmin.xlane.f32.xlu0 %v2003
      %v2005 = vpop.xlane.xlu0 %2004
      %v2006 = vsel %vm1639, %v1922, inf
      %2007 = vmin.xlane.f32.xlu0 %v2006
      %v2008 = vpop.xlane.xlu0 %2007
      %v2009 = vsel %vm1639, %v1923, inf
      %2010 = vmin.xlane.f32.xlu0 %v2009
      %v2011 = vpop.xlane.xlu0 %2010
      %v2012 = vsel %vm1639, %v1924, inf
      %2013 = vmin.xlane.f32.xlu0 %v2012
      %v2014 = vpop.xlane.xlu0 %2013
      %v2015 = vsel %vm1639, %v1925, inf
      %2016 = vmin.xlane.f32.xlu0 %v2015
      %v2017 = vpop.xlane.xlu0 %2016
      %v2018 = vsel %vm1639, %v1926, inf
      %2019 = vmin.xlane.f32.xlu0 %v2018
      %v2020 = vpop.xlane.xlu0 %2019
      %v2021 = vsel %vm1639, %v1927, inf
      %2022 = vmin.xlane.f32.xlu0 %v2021
      %v2023 = vpop.xlane.xlu0 %2022
      %v2056 = vand.u32 %v1930, 4294967280
      %v2057 = vand.u32 %v1933, 4294967280
      %v2058 = vand.u32 %v1936, 4294967280
      %v2059 = vand.u32 %v1939, 4294967280
      %v2060 = vand.u32 %v1942, 4294967280
      %v2061 = vand.u32 %v1945, 4294967280
      %v2062 = vand.u32 %v1948, 4294967280
      %v2063 = vand.u32 %v1951, 4294967280
      %v2064 = vand.u32 %v1954, 4294967280
      %v2065 = vand.u32 %v1957, 4294967280
      %v2066 = vand.u32 %v1960, 4294967280
      %v2067 = vand.u32 %v1963, 4294967280
      %v2068 = vand.u32 %v1966, 4294967280
      %v2069 = vand.u32 %v1969, 4294967280
      %v2070 = vand.u32 %v1972, 4294967280
      %v2071 = vand.u32 %v1975, 4294967280
      %v2072 = vand.u32 %v1978, 4294967280
      %v2073 = vand.u32 %v1981, 4294967280
      %v2074 = vand.u32 %v1984, 4294967280
      %v2075 = vand.u32 %v1987, 4294967280
      %v2076 = vand.u32 %v1990, 4294967280
      %v2077 = vand.u32 %v1993, 4294967280
      %v2078 = vand.u32 %v1996, 4294967280
      %v2079 = vand.u32 %v1999, 4294967280
      %v2080 = vand.u32 %v2002, 4294967280
      %v2081 = vand.u32 %v2005, 4294967280
      %v2082 = vand.u32 %v2008, 4294967280
      %v2083 = vand.u32 %v2011, 4294967280
      %v2084 = vand.u32 %v2014, 4294967280
      %v2085 = vand.u32 %v2017, 4294967280
      %v2086 = vand.u32 %v2020, 4294967280
      %v2087 = vand.u32 %v2023, 4294967280
      %v2120 = vrsqrt.pop %v1383
      %v2121 = vmul.f32 %v1383, %v2120
      %vm2122 = vcmp.eq.f32.partialorder %v1383, inf
      %v2123 = vsel %vm2122, %v1383, %v2121
      %vm2124 = vcmp.eq.f32.partialorder %v1383, 0.0
      %v2125 = vand.u32 %v1383, 2147483648
      %v2126 = vsel %vm2124, %v2125, %v2123
      %v2127 = vrsqrt.pop %v1384
      %v2128 = vmul.f32 %v1384, %v2127
      %vm2129 = vcmp.eq.f32.partialorder %v1384, inf
      %v2130 = vsel %vm2129, %v1384, %v2128
      %vm2131 = vcmp.eq.f32.partialorder %v1384, 0.0
      %v2132 = vand.u32 %v1384, 2147483648
      %v2133 = vsel %vm2131, %v2132, %v2130
      %v2134 = vrsqrt.pop %v1385
      %v2135 = vmul.f32 %v1385, %v2134
      %vm2136 = vcmp.eq.f32.partialorder %v1385, inf
      %v2137 = vsel %vm2136, %v1385, %v2135
      %vm2138 = vcmp.eq.f32.partialorder %v1385, 0.0
      %v2139 = vand.u32 %v1385, 2147483648
      %v2140 = vsel %vm2138, %v2139, %v2137
      %v2141 = vrsqrt.pop %v1386
      %v2142 = vmul.f32 %v1386, %v2141
      %vm2143 = vcmp.eq.f32.partialorder %v1386, inf
      %v2144 = vsel %vm2143, %v1386, %v2142
      %vm2145 = vcmp.eq.f32.partialorder %v1386, 0.0
      %v2146 = vand.u32 %v1386, 2147483648
      %v2147 = vsel %vm2145, %v2146, %v2144
      %v2148 = vrsqrt.pop %v1387
      %v2149 = vmul.f32 %v1387, %v2148
      %vm2150 = vcmp.eq.f32.partialorder %v1387, inf
      %v2151 = vsel %vm2150, %v1387, %v2149
      %vm2152 = vcmp.eq.f32.partialorder %v1387, 0.0
      %v2153 = vand.u32 %v1387, 2147483648
      %v2154 = vsel %vm2152, %v2153, %v2151
      %v2155 = vrsqrt.pop %v1388
      %v2156 = vmul.f32 %v1388, %v2155
      %vm2157 = vcmp.eq.f32.partialorder %v1388, inf
      %v2158 = vsel %vm2157, %v1388, %v2156
      %vm2159 = vcmp.eq.f32.partialorder %v1388, 0.0
      %v2160 = vand.u32 %v1388, 2147483648
      %v2161 = vsel %vm2159, %v2160, %v2158
      %v2162 = vrsqrt.pop %v1389
      %v2163 = vmul.f32 %v1389, %v2162
      %vm2164 = vcmp.eq.f32.partialorder %v1389, inf
      %v2165 = vsel %vm2164, %v1389, %v2163
      %vm2166 = vcmp.eq.f32.partialorder %v1389, 0.0
      %v2167 = vand.u32 %v1389, 2147483648
      %v2168 = vsel %vm2166, %v2167, %v2165
      %v2169 = vrsqrt.pop %v1390
      %v2170 = vmul.f32 %v1390, %v2169
      %vm2171 = vcmp.eq.f32.partialorder %v1390, inf
      %v2172 = vsel %vm2171, %v1390, %v2170
      %vm2173 = vcmp.eq.f32.partialorder %v1390, 0.0
      %v2174 = vand.u32 %v1390, 2147483648
      %v2175 = vsel %vm2173, %v2174, %v2172
      %v2176 = vrsqrt.pop %v1391
      %v2177 = vmul.f32 %v1391, %v2176
      %vm2178 = vcmp.eq.f32.partialorder %v1391, inf
      %v2179 = vsel %vm2178, %v1391, %v2177
      %vm2180 = vcmp.eq.f32.partialorder %v1391, 0.0
      %v2181 = vand.u32 %v1391, 2147483648
      %v2182 = vsel %vm2180, %v2181, %v2179
      %v2183 = vrsqrt.pop %v1392
      %v2184 = vmul.f32 %v1392, %v2183
      %vm2185 = vcmp.eq.f32.partialorder %v1392, inf
      %v2186 = vsel %vm2185, %v1392, %v2184
      %vm2187 = vcmp.eq.f32.partialorder %v1392, 0.0
      %v2188 = vand.u32 %v1392, 2147483648
      %v2189 = vsel %vm2187, %v2188, %v2186
      %v2190 = vrsqrt.pop %v1393
      %v2191 = vmul.f32 %v1393, %v2190
      %vm2192 = vcmp.eq.f32.partialorder %v1393, inf
      %v2193 = vsel %vm2192, %v1393, %v2191
      %vm2194 = vcmp.eq.f32.partialorder %v1393, 0.0
      %v2195 = vand.u32 %v1393, 2147483648
      %v2196 = vsel %vm2194, %v2195, %v2193
      %v2197 = vrsqrt.pop %v1394
      %v2198 = vmul.f32 %v1394, %v2197
      %vm2199 = vcmp.eq.f32.partialorder %v1394, inf
      %v2200 = vsel %vm2199, %v1394, %v2198
      %vm2201 = vcmp.eq.f32.partialorder %v1394, 0.0
      %v2202 = vand.u32 %v1394, 2147483648
      %v2203 = vsel %vm2201, %v2202, %v2200
      %v2204 = vrsqrt.pop %v1395
      %v2205 = vmul.f32 %v1395, %v2204
      %vm2206 = vcmp.eq.f32.partialorder %v1395, inf
      %v2207 = vsel %vm2206, %v1395, %v2205
      %vm2208 = vcmp.eq.f32.partialorder %v1395, 0.0
      %v2209 = vand.u32 %v1395, 2147483648
      %v2210 = vsel %vm2208, %v2209, %v2207
      %v2211 = vrsqrt.pop %v1396
      %v2212 = vmul.f32 %v1396, %v2211
      %vm2213 = vcmp.eq.f32.partialorder %v1396, inf
      %v2214 = vsel %vm2213, %v1396, %v2212
      %vm2215 = vcmp.eq.f32.partialorder %v1396, 0.0
      %v2216 = vand.u32 %v1396, 2147483648
      %v2217 = vsel %vm2215, %v2216, %v2214
      %v2218 = vrsqrt.pop %v1397
      %v2219 = vmul.f32 %v1397, %v2218
      %vm2220 = vcmp.eq.f32.partialorder %v1397, inf
      %v2221 = vsel %vm2220, %v1397, %v2219
      %vm2222 = vcmp.eq.f32.partialorder %v1397, 0.0
      %v2223 = vand.u32 %v1397, 2147483648
      %v2224 = vsel %vm2222, %v2223, %v2221
      %v2225 = vrsqrt.pop %v1398
      %v2226 = vmul.f32 %v1398, %v2225
      %vm2227 = vcmp.eq.f32.partialorder %v1398, inf
      %v2228 = vsel %vm2227, %v1398, %v2226
      %vm2229 = vcmp.eq.f32.partialorder %v1398, 0.0
      %v2230 = vand.u32 %v1398, 2147483648
      %v2231 = vsel %vm2229, %v2230, %v2228
      %v2232 = vrsqrt.pop %v1399
      %v2233 = vmul.f32 %v1399, %v2232
      %vm2234 = vcmp.eq.f32.partialorder %v1399, inf
      %v2235 = vsel %vm2234, %v1399, %v2233
      %vm2236 = vcmp.eq.f32.partialorder %v1399, 0.0
      %v2237 = vand.u32 %v1399, 2147483648
      %v2238 = vsel %vm2236, %v2237, %v2235
      %v2239 = vrsqrt.pop %v1400
      %v2240 = vmul.f32 %v1400, %v2239
      %vm2241 = vcmp.eq.f32.partialorder %v1400, inf
      %v2242 = vsel %vm2241, %v1400, %v2240
      %vm2243 = vcmp.eq.f32.partialorder %v1400, 0.0
      %v2244 = vand.u32 %v1400, 2147483648
      %v2245 = vsel %vm2243, %v2244, %v2242
      %v2246 = vrsqrt.pop %v1401
      %v2247 = vmul.f32 %v1401, %v2246
      %vm2248 = vcmp.eq.f32.partialorder %v1401, inf
      %v2249 = vsel %vm2248, %v1401, %v2247
      %vm2250 = vcmp.eq.f32.partialorder %v1401, 0.0
      %v2251 = vand.u32 %v1401, 2147483648
      %v2252 = vsel %vm2250, %v2251, %v2249
      %v2253 = vrsqrt.pop %v1402
      %v2254 = vmul.f32 %v1402, %v2253
      %vm2255 = vcmp.eq.f32.partialorder %v1402, inf
      %v2256 = vsel %vm2255, %v1402, %v2254
      %vm2257 = vcmp.eq.f32.partialorder %v1402, 0.0
      %v2258 = vand.u32 %v1402, 2147483648
      %v2259 = vsel %vm2257, %v2258, %v2256
      %v2260 = vrsqrt.pop %v1403
      %v2261 = vmul.f32 %v1403, %v2260
      %vm2262 = vcmp.eq.f32.partialorder %v1403, inf
      %v2263 = vsel %vm2262, %v1403, %v2261
      %vm2264 = vcmp.eq.f32.partialorder %v1403, 0.0
      %v2265 = vand.u32 %v1403, 2147483648
      %v2266 = vsel %vm2264, %v2265, %v2263
      %v2267 = vrsqrt.pop %v1404
      %v2268 = vmul.f32 %v1404, %v2267
      %vm2269 = vcmp.eq.f32.partialorder %v1404, inf
      %v2270 = vsel %vm2269, %v1404, %v2268
      %vm2271 = vcmp.eq.f32.partialorder %v1404, 0.0
      %v2272 = vand.u32 %v1404, 2147483648
      %v2273 = vsel %vm2271, %v2272, %v2270
      %v2274 = vrsqrt.pop %v1405
      %v2275 = vmul.f32 %v1405, %v2274
      %vm2276 = vcmp.eq.f32.partialorder %v1405, inf
      %v2277 = vsel %vm2276, %v1405, %v2275
      %vm2278 = vcmp.eq.f32.partialorder %v1405, 0.0
      %v2279 = vand.u32 %v1405, 2147483648
      %v2280 = vsel %vm2278, %v2279, %v2277
      %v2281 = vrsqrt.pop %v1406
      %v2282 = vmul.f32 %v1406, %v2281
      %vm2283 = vcmp.eq.f32.partialorder %v1406, inf
      %v2284 = vsel %vm2283, %v1406, %v2282
      %vm2285 = vcmp.eq.f32.partialorder %v1406, 0.0
      %v2286 = vand.u32 %v1406, 2147483648
      %v2287 = vsel %vm2285, %v2286, %v2284
      %v2288 = vrsqrt.pop %v1407
      %v2289 = vmul.f32 %v1407, %v2288
      %vm2290 = vcmp.eq.f32.partialorder %v1407, inf
      %v2291 = vsel %vm2290, %v1407, %v2289
      %vm2292 = vcmp.eq.f32.partialorder %v1407, 0.0
      %v2293 = vand.u32 %v1407, 2147483648
      %v2294 = vsel %vm2292, %v2293, %v2291
      %v2295 = vrsqrt.pop %v1408
      %v2296 = vmul.f32 %v1408, %v2295
      %vm2297 = vcmp.eq.f32.partialorder %v1408, inf
      %v2298 = vsel %vm2297, %v1408, %v2296
      %vm2299 = vcmp.eq.f32.partialorder %v1408, 0.0
      %v2300 = vand.u32 %v1408, 2147483648
      %v2301 = vsel %vm2299, %v2300, %v2298
      %v2302 = vrsqrt.pop %v1409
      %v2303 = vmul.f32 %v1409, %v2302
      %vm2304 = vcmp.eq.f32.partialorder %v1409, inf
      %v2305 = vsel %vm2304, %v1409, %v2303
      %vm2306 = vcmp.eq.f32.partialorder %v1409, 0.0
      %v2307 = vand.u32 %v1409, 2147483648
      %v2308 = vsel %vm2306, %v2307, %v2305
      %v2309 = vrsqrt.pop %v1410
      %v2310 = vmul.f32 %v1410, %v2309
      %vm2311 = vcmp.eq.f32.partialorder %v1410, inf
      %v2312 = vsel %vm2311, %v1410, %v2310
      %vm2313 = vcmp.eq.f32.partialorder %v1410, 0.0
      %v2314 = vand.u32 %v1410, 2147483648
      %v2315 = vsel %vm2313, %v2314, %v2312
      %v2316 = vrsqrt.pop %v1411
      %v2317 = vmul.f32 %v1411, %v2316
      %vm2318 = vcmp.eq.f32.partialorder %v1411, inf
      %v2319 = vsel %vm2318, %v1411, %v2317
      %vm2320 = vcmp.eq.f32.partialorder %v1411, 0.0
      %v2321 = vand.u32 %v1411, 2147483648
      %v2322 = vsel %vm2320, %v2321, %v2319
      %v2323 = vrsqrt.pop %v1412
      %v2324 = vmul.f32 %v1412, %v2323
      %vm2325 = vcmp.eq.f32.partialorder %v1412, inf
      %v2326 = vsel %vm2325, %v1412, %v2324
      %vm2327 = vcmp.eq.f32.partialorder %v1412, 0.0
      %v2328 = vand.u32 %v1412, 2147483648
      %v2329 = vsel %vm2327, %v2328, %v2326
      %v2330 = vrsqrt.pop %v1413
      %v2331 = vmul.f32 %v1413, %v2330
      %vm2332 = vcmp.eq.f32.partialorder %v1413, inf
      %v2333 = vsel %vm2332, %v1413, %v2331
      %vm2334 = vcmp.eq.f32.partialorder %v1413, 0.0
      %v2335 = vand.u32 %v1413, 2147483648
      %v2336 = vsel %vm2334, %v2335, %v2333
      %v2337 = vrsqrt.pop %v1414
      %v2338 = vmul.f32 %v1414, %v2337
      %vm2339 = vcmp.eq.f32.partialorder %v1414, inf
      %v2340 = vsel %vm2339, %v1414, %v2338
      %vm2341 = vcmp.eq.f32.partialorder %v1414, 0.0
      %v2342 = vand.u32 %v1414, 2147483648
      %v2343 = vsel %vm2341, %v2342, %v2340
      %v2344 = vrsqrt.pop %v1768
      %v2345 = vmul.f32 %v1768, %v2344
      %vm2346 = vcmp.eq.f32.partialorder %v1768, inf
      %v2347 = vsel %vm2346, %v1768, %v2345
      %vm2348 = vcmp.eq.f32.partialorder %v1768, 0.0
      %v2349 = vand.u32 %v1768, 2147483648
      %v2350 = vsel %vm2348, %v2349, %v2347
      %v2351 = vrsqrt.pop %v1769
      %v2352 = vmul.f32 %v1769, %v2351
      %vm2353 = vcmp.eq.f32.partialorder %v1769, inf
      %v2354 = vsel %vm2353, %v1769, %v2352
      %vm2355 = vcmp.eq.f32.partialorder %v1769, 0.0
      %v2356 = vand.u32 %v1769, 2147483648
      %v2357 = vsel %vm2355, %v2356, %v2354
      %v2358 = vrsqrt.pop %v1770
      %v2359 = vmul.f32 %v1770, %v2358
      %vm2360 = vcmp.eq.f32.partialorder %v1770, inf
      %v2361 = vsel %vm2360, %v1770, %v2359
      %vm2362 = vcmp.eq.f32.partialorder %v1770, 0.0
      %v2363 = vand.u32 %v1770, 2147483648
      %v2364 = vsel %vm2362, %v2363, %v2361
      %v2365 = vrsqrt.pop %v1771
      %v2366 = vmul.f32 %v1771, %v2365
      %vm2367 = vcmp.eq.f32.partialorder %v1771, inf
      %v2368 = vsel %vm2367, %v1771, %v2366
      %vm2369 = vcmp.eq.f32.partialorder %v1771, 0.0
      %v2370 = vand.u32 %v1771, 2147483648
      %v2371 = vsel %vm2369, %v2370, %v2368
      %v2372 = vrsqrt.pop %v1772
      %v2373 = vmul.f32 %v1772, %v2372
      %vm2374 = vcmp.eq.f32.partialorder %v1772, inf
      %v2375 = vsel %vm2374, %v1772, %v2373
      %vm2376 = vcmp.eq.f32.partialorder %v1772, 0.0
      %v2377 = vand.u32 %v1772, 2147483648
      %v2378 = vsel %vm2376, %v2377, %v2375
      %v2379 = vrsqrt.pop %v1773
      %v2380 = vmul.f32 %v1773, %v2379
      %vm2381 = vcmp.eq.f32.partialorder %v1773, inf
      %v2382 = vsel %vm2381, %v1773, %v2380
      %vm2383 = vcmp.eq.f32.partialorder %v1773, 0.0
      %v2384 = vand.u32 %v1773, 2147483648
      %v2385 = vsel %vm2383, %v2384, %v2382
      %v2386 = vrsqrt.pop %v1774
      %v2387 = vmul.f32 %v1774, %v2386
      %vm2388 = vcmp.eq.f32.partialorder %v1774, inf
      %v2389 = vsel %vm2388, %v1774, %v2387
      %vm2390 = vcmp.eq.f32.partialorder %v1774, 0.0
      %v2391 = vand.u32 %v1774, 2147483648
      %v2392 = vsel %vm2390, %v2391, %v2389
      %v2393 = vrsqrt.pop %v1775
      %v2394 = vmul.f32 %v1775, %v2393
      %vm2395 = vcmp.eq.f32.partialorder %v1775, inf
      %v2396 = vsel %vm2395, %v1775, %v2394
      %vm2397 = vcmp.eq.f32.partialorder %v1775, 0.0
      %v2398 = vand.u32 %v1775, 2147483648
      %v2399 = vsel %vm2397, %v2398, %v2396
      %v2400 = vrsqrt.pop %v1776
      %v2401 = vmul.f32 %v1776, %v2400
      %vm2402 = vcmp.eq.f32.partialorder %v1776, inf
      %v2403 = vsel %vm2402, %v1776, %v2401
      %vm2404 = vcmp.eq.f32.partialorder %v1776, 0.0
      %v2405 = vand.u32 %v1776, 2147483648
      %v2406 = vsel %vm2404, %v2405, %v2403
      %v2407 = vrsqrt.pop %v1777
      %v2408 = vmul.f32 %v1777, %v2407
      %vm2409 = vcmp.eq.f32.partialorder %v1777, inf
      %v2410 = vsel %vm2409, %v1777, %v2408
      %vm2411 = vcmp.eq.f32.partialorder %v1777, 0.0
      %v2412 = vand.u32 %v1777, 2147483648
      %v2413 = vsel %vm2411, %v2412, %v2410
      %v2414 = vrsqrt.pop %v1778
      %v2415 = vmul.f32 %v1778, %v2414
      %vm2416 = vcmp.eq.f32.partialorder %v1778, inf
      %v2417 = vsel %vm2416, %v1778, %v2415
      %vm2418 = vcmp.eq.f32.partialorder %v1778, 0.0
      %v2419 = vand.u32 %v1778, 2147483648
      %v2420 = vsel %vm2418, %v2419, %v2417
      %v2421 = vrsqrt.pop %v1779
      %v2422 = vmul.f32 %v1779, %v2421
      %vm2423 = vcmp.eq.f32.partialorder %v1779, inf
      %v2424 = vsel %vm2423, %v1779, %v2422
      %vm2425 = vcmp.eq.f32.partialorder %v1779, 0.0
      %v2426 = vand.u32 %v1779, 2147483648
      %v2427 = vsel %vm2425, %v2426, %v2424
      %v2428 = vrsqrt.pop %v1780
      %v2429 = vmul.f32 %v1780, %v2428
      %vm2430 = vcmp.eq.f32.partialorder %v1780, inf
      %v2431 = vsel %vm2430, %v1780, %v2429
      %vm2432 = vcmp.eq.f32.partialorder %v1780, 0.0
      %v2433 = vand.u32 %v1780, 2147483648
      %v2434 = vsel %vm2432, %v2433, %v2431
      %v2435 = vrsqrt.pop %v1781
      %v2436 = vmul.f32 %v1781, %v2435
      %vm2437 = vcmp.eq.f32.partialorder %v1781, inf
      %v2438 = vsel %vm2437, %v1781, %v2436
      %vm2439 = vcmp.eq.f32.partialorder %v1781, 0.0
      %v2440 = vand.u32 %v1781, 2147483648
      %v2441 = vsel %vm2439, %v2440, %v2438
      %v2442 = vrsqrt.pop %v1782
      %v2443 = vmul.f32 %v1782, %v2442
      %vm2444 = vcmp.eq.f32.partialorder %v1782, inf
      %v2445 = vsel %vm2444, %v1782, %v2443
      %vm2446 = vcmp.eq.f32.partialorder %v1782, 0.0
      %v2447 = vand.u32 %v1782, 2147483648
      %v2448 = vsel %vm2446, %v2447, %v2445
      %v2449 = vrsqrt.pop %v1783
      %v2450 = vmul.f32 %v1783, %v2449
      %vm2451 = vcmp.eq.f32.partialorder %v1783, inf
      %v2452 = vsel %vm2451, %v1783, %v2450
      %vm2453 = vcmp.eq.f32.partialorder %v1783, 0.0
      %v2454 = vand.u32 %v1783, 2147483648
      %v2455 = vsel %vm2453, %v2454, %v2452
      %v2456 = vrsqrt.pop %v1784
      %v2457 = vmul.f32 %v1784, %v2456
      %vm2458 = vcmp.eq.f32.partialorder %v1784, inf
      %v2459 = vsel %vm2458, %v1784, %v2457
      %vm2460 = vcmp.eq.f32.partialorder %v1784, 0.0
      %v2461 = vand.u32 %v1784, 2147483648
      %v2462 = vsel %vm2460, %v2461, %v2459
      %v2463 = vrsqrt.pop %v1785
      %v2464 = vmul.f32 %v1785, %v2463
      %vm2465 = vcmp.eq.f32.partialorder %v1785, inf
      %v2466 = vsel %vm2465, %v1785, %v2464
      %vm2467 = vcmp.eq.f32.partialorder %v1785, 0.0
      %v2468 = vand.u32 %v1785, 2147483648
      %v2469 = vsel %vm2467, %v2468, %v2466
      %v2470 = vrsqrt.pop %v1786
      %v2471 = vmul.f32 %v1786, %v2470
      %vm2472 = vcmp.eq.f32.partialorder %v1786, inf
      %v2473 = vsel %vm2472, %v1786, %v2471
      %vm2474 = vcmp.eq.f32.partialorder %v1786, 0.0
      %v2475 = vand.u32 %v1786, 2147483648
      %v2476 = vsel %vm2474, %v2475, %v2473
      %v2477 = vrsqrt.pop %v1787
      %v2478 = vmul.f32 %v1787, %v2477
      %vm2479 = vcmp.eq.f32.partialorder %v1787, inf
      %v2480 = vsel %vm2479, %v1787, %v2478
      %vm2481 = vcmp.eq.f32.partialorder %v1787, 0.0
      %v2482 = vand.u32 %v1787, 2147483648
      %v2483 = vsel %vm2481, %v2482, %v2480
      %v2484 = vrsqrt.pop %v1788
      %v2485 = vmul.f32 %v1788, %v2484
      %vm2486 = vcmp.eq.f32.partialorder %v1788, inf
      %v2487 = vsel %vm2486, %v1788, %v2485
      %vm2488 = vcmp.eq.f32.partialorder %v1788, 0.0
      %v2489 = vand.u32 %v1788, 2147483648
      %v2490 = vsel %vm2488, %v2489, %v2487
      %v2491 = vrsqrt.pop %v1789
      %v2492 = vmul.f32 %v1789, %v2491
      %vm2493 = vcmp.eq.f32.partialorder %v1789, inf
      %v2494 = vsel %vm2493, %v1789, %v2492
      %vm2495 = vcmp.eq.f32.partialorder %v1789, 0.0
      %v2496 = vand.u32 %v1789, 2147483648
      %v2497 = vsel %vm2495, %v2496, %v2494
      %v2498 = vrsqrt.pop %v1790
      %v2499 = vmul.f32 %v1790, %v2498
      %vm2500 = vcmp.eq.f32.partialorder %v1790, inf
      %v2501 = vsel %vm2500, %v1790, %v2499
      %vm2502 = vcmp.eq.f32.partialorder %v1790, 0.0
      %v2503 = vand.u32 %v1790, 2147483648
      %v2504 = vsel %vm2502, %v2503, %v2501
      %v2505 = vrsqrt.pop %v1791
      %v2506 = vmul.f32 %v1791, %v2505
      %vm2507 = vcmp.eq.f32.partialorder %v1791, inf
      %v2508 = vsel %vm2507, %v1791, %v2506
      %vm2509 = vcmp.eq.f32.partialorder %v1791, 0.0
      %v2510 = vand.u32 %v1791, 2147483648
      %v2511 = vsel %vm2509, %v2510, %v2508
      %v2512 = vrsqrt.pop %v1792
      %v2513 = vmul.f32 %v1792, %v2512
      %vm2514 = vcmp.eq.f32.partialorder %v1792, inf
      %v2515 = vsel %vm2514, %v1792, %v2513
      %vm2516 = vcmp.eq.f32.partialorder %v1792, 0.0
      %v2517 = vand.u32 %v1792, 2147483648
      %v2518 = vsel %vm2516, %v2517, %v2515
      %v2519 = vrsqrt.pop %v1793
      %v2520 = vmul.f32 %v1793, %v2519
      %vm2521 = vcmp.eq.f32.partialorder %v1793, inf
      %v2522 = vsel %vm2521, %v1793, %v2520
      %vm2523 = vcmp.eq.f32.partialorder %v1793, 0.0
      %v2524 = vand.u32 %v1793, 2147483648
      %v2525 = vsel %vm2523, %v2524, %v2522
      %v2526 = vrsqrt.pop %v1794
      %v2527 = vmul.f32 %v1794, %v2526
      %vm2528 = vcmp.eq.f32.partialorder %v1794, inf
      %v2529 = vsel %vm2528, %v1794, %v2527
      %vm2530 = vcmp.eq.f32.partialorder %v1794, 0.0
      %v2531 = vand.u32 %v1794, 2147483648
      %v2532 = vsel %vm2530, %v2531, %v2529
      %v2533 = vrsqrt.pop %v1795
      %v2534 = vmul.f32 %v1795, %v2533
      %vm2535 = vcmp.eq.f32.partialorder %v1795, inf
      %v2536 = vsel %vm2535, %v1795, %v2534
      %vm2537 = vcmp.eq.f32.partialorder %v1795, 0.0
      %v2538 = vand.u32 %v1795, 2147483648
      %v2539 = vsel %vm2537, %v2538, %v2536
      %v2540 = vrsqrt.pop %v1796
      %v2541 = vmul.f32 %v1796, %v2540
      %vm2542 = vcmp.eq.f32.partialorder %v1796, inf
      %v2543 = vsel %vm2542, %v1796, %v2541
      %vm2544 = vcmp.eq.f32.partialorder %v1796, 0.0
      %v2545 = vand.u32 %v1796, 2147483648
      %v2546 = vsel %vm2544, %v2545, %v2543
      %v2547 = vrsqrt.pop %v1797
      %v2548 = vmul.f32 %v1797, %v2547
      %vm2549 = vcmp.eq.f32.partialorder %v1797, inf
      %v2550 = vsel %vm2549, %v1797, %v2548
      %vm2551 = vcmp.eq.f32.partialorder %v1797, 0.0
      %v2552 = vand.u32 %v1797, 2147483648
      %v2553 = vsel %vm2551, %v2552, %v2550
      %v2554 = vrsqrt.pop %v1798
      %v2555 = vmul.f32 %v1798, %v2554
      %vm2556 = vcmp.eq.f32.partialorder %v1798, inf
      %v2557 = vsel %vm2556, %v1798, %v2555
      %vm2558 = vcmp.eq.f32.partialorder %v1798, 0.0
      %v2559 = vand.u32 %v1798, 2147483648
      %v2560 = vsel %vm2558, %v2559, %v2557
      %v2561 = vrsqrt.pop %v1799
      %v2562 = vmul.f32 %v1799, %v2561
      %vm2563 = vcmp.eq.f32.partialorder %v1799, inf
      %v2564 = vsel %vm2563, %v1799, %v2562
      %vm2565 = vcmp.eq.f32.partialorder %v1799, 0.0
      %v2566 = vand.u32 %v1799, 2147483648
      %v2567 = vsel %vm2565, %v2566, %v2564
      %v2568 = vrsqrt.pop %v2056
      %v2569 = vmul.f32 %v2056, %v2568
      %vm2570 = vcmp.eq.f32.partialorder %v2056, inf
      %v2571 = vsel %vm2570, %v2056, %v2569
      %vm2572 = vcmp.eq.f32.partialorder %v2056, 0.0
      %v2573 = vand.u32 %v2056, 2147483648
      %v2574 = vsel %vm2572, %v2573, %v2571
      %v2575 = vrsqrt.pop %v2057
      %v2576 = vmul.f32 %v2057, %v2575
      %vm2577 = vcmp.eq.f32.partialorder %v2057, inf
      %v2578 = vsel %vm2577, %v2057, %v2576
      %vm2579 = vcmp.eq.f32.partialorder %v2057, 0.0
      %v2580 = vand.u32 %v2057, 2147483648
      %v2581 = vsel %vm2579, %v2580, %v2578
      %v2582 = vrsqrt.pop %v2058
      %v2583 = vmul.f32 %v2058, %v2582
      %vm2584 = vcmp.eq.f32.partialorder %v2058, inf
      %v2585 = vsel %vm2584, %v2058, %v2583
      %vm2586 = vcmp.eq.f32.partialorder %v2058, 0.0
      %v2587 = vand.u32 %v2058, 2147483648
      %v2588 = vsel %vm2586, %v2587, %v2585
      %v2589 = vrsqrt.pop %v2059
      %v2590 = vmul.f32 %v2059, %v2589
      %vm2591 = vcmp.eq.f32.partialorder %v2059, inf
      %v2592 = vsel %vm2591, %v2059, %v2590
      %vm2593 = vcmp.eq.f32.partialorder %v2059, 0.0
      %v2594 = vand.u32 %v2059, 2147483648
      %v2595 = vsel %vm2593, %v2594, %v2592
      %v2596 = vrsqrt.pop %v2060
      %v2597 = vmul.f32 %v2060, %v2596
      %vm2598 = vcmp.eq.f32.partialorder %v2060, inf
      %v2599 = vsel %vm2598, %v2060, %v2597
      %vm2600 = vcmp.eq.f32.partialorder %v2060, 0.0
      %v2601 = vand.u32 %v2060, 2147483648
      %v2602 = vsel %vm2600, %v2601, %v2599
      %v2603 = vrsqrt.pop %v2061
      %v2604 = vmul.f32 %v2061, %v2603
      %vm2605 = vcmp.eq.f32.partialorder %v2061, inf
      %v2606 = vsel %vm2605, %v2061, %v2604
      %vm2607 = vcmp.eq.f32.partialorder %v2061, 0.0
      %v2608 = vand.u32 %v2061, 2147483648
      %v2609 = vsel %vm2607, %v2608, %v2606
      %v2610 = vrsqrt.pop %v2062
      %v2611 = vmul.f32 %v2062, %v2610
      %vm2612 = vcmp.eq.f32.partialorder %v2062, inf
      %v2613 = vsel %vm2612, %v2062, %v2611
      %vm2614 = vcmp.eq.f32.partialorder %v2062, 0.0
      %v2615 = vand.u32 %v2062, 2147483648
      %v2616 = vsel %vm2614, %v2615, %v2613
      %v2617 = vrsqrt.pop %v2063
      %v2618 = vmul.f32 %v2063, %v2617
      %vm2619 = vcmp.eq.f32.partialorder %v2063, inf
      %v2620 = vsel %vm2619, %v2063, %v2618
      %vm2621 = vcmp.eq.f32.partialorder %v2063, 0.0
      %v2622 = vand.u32 %v2063, 2147483648
      %v2623 = vsel %vm2621, %v2622, %v2620
      %v2624 = vrsqrt.pop %v2064
      %v2625 = vmul.f32 %v2064, %v2624
      %vm2626 = vcmp.eq.f32.partialorder %v2064, inf
      %v2627 = vsel %vm2626, %v2064, %v2625
      %vm2628 = vcmp.eq.f32.partialorder %v2064, 0.0
      %v2629 = vand.u32 %v2064, 2147483648
      %v2630 = vsel %vm2628, %v2629, %v2627
      %v2631 = vrsqrt.pop %v2065
      %v2632 = vmul.f32 %v2065, %v2631
      %vm2633 = vcmp.eq.f32.partialorder %v2065, inf
      %v2634 = vsel %vm2633, %v2065, %v2632
      %vm2635 = vcmp.eq.f32.partialorder %v2065, 0.0
      %v2636 = vand.u32 %v2065, 2147483648
      %v2637 = vsel %vm2635, %v2636, %v2634
      %v2638 = vrsqrt.pop %v2066
      %v2639 = vmul.f32 %v2066, %v2638
      %vm2640 = vcmp.eq.f32.partialorder %v2066, inf
      %v2641 = vsel %vm2640, %v2066, %v2639
      %vm2642 = vcmp.eq.f32.partialorder %v2066, 0.0
      %v2643 = vand.u32 %v2066, 2147483648
      %v2644 = vsel %vm2642, %v2643, %v2641
      %v2645 = vrsqrt.pop %v2067
      %v2646 = vmul.f32 %v2067, %v2645
      %vm2647 = vcmp.eq.f32.partialorder %v2067, inf
      %v2648 = vsel %vm2647, %v2067, %v2646
      %vm2649 = vcmp.eq.f32.partialorder %v2067, 0.0
      %v2650 = vand.u32 %v2067, 2147483648
      %v2651 = vsel %vm2649, %v2650, %v2648
      %v2652 = vrsqrt.pop %v2068
      %v2653 = vmul.f32 %v2068, %v2652
      %vm2654 = vcmp.eq.f32.partialorder %v2068, inf
      %v2655 = vsel %vm2654, %v2068, %v2653
      %vm2656 = vcmp.eq.f32.partialorder %v2068, 0.0
      %v2657 = vand.u32 %v2068, 2147483648
      %v2658 = vsel %vm2656, %v2657, %v2655
      %v2659 = vrsqrt.pop %v2069
      %v2660 = vmul.f32 %v2069, %v2659
      %vm2661 = vcmp.eq.f32.partialorder %v2069, inf
      %v2662 = vsel %vm2661, %v2069, %v2660
      %vm2663 = vcmp.eq.f32.partialorder %v2069, 0.0
      %v2664 = vand.u32 %v2069, 2147483648
      %v2665 = vsel %vm2663, %v2664, %v2662
      %v2666 = vrsqrt.pop %v2070
      %v2667 = vmul.f32 %v2070, %v2666
      %vm2668 = vcmp.eq.f32.partialorder %v2070, inf
      %v2669 = vsel %vm2668, %v2070, %v2667
      %vm2670 = vcmp.eq.f32.partialorder %v2070, 0.0
      %v2671 = vand.u32 %v2070, 2147483648
      %v2672 = vsel %vm2670, %v2671, %v2669
      %v2673 = vrsqrt.pop %v2071
      %v2674 = vmul.f32 %v2071, %v2673
      %vm2675 = vcmp.eq.f32.partialorder %v2071, inf
      %v2676 = vsel %vm2675, %v2071, %v2674
      %vm2677 = vcmp.eq.f32.partialorder %v2071, 0.0
      %v2678 = vand.u32 %v2071, 2147483648
      %v2679 = vsel %vm2677, %v2678, %v2676
      %v2680 = vrsqrt.pop %v2072
      %v2681 = vmul.f32 %v2072, %v2680
      %vm2682 = vcmp.eq.f32.partialorder %v2072, inf
      %v2683 = vsel %vm2682, %v2072, %v2681
      %vm2684 = vcmp.eq.f32.partialorder %v2072, 0.0
      %v2685 = vand.u32 %v2072, 2147483648
      %v2686 = vsel %vm2684, %v2685, %v2683
      %v2687 = vrsqrt.pop %v2073
      %v2688 = vmul.f32 %v2073, %v2687
      %vm2689 = vcmp.eq.f32.partialorder %v2073, inf
      %v2690 = vsel %vm2689, %v2073, %v2688
      %vm2691 = vcmp.eq.f32.partialorder %v2073, 0.0
      %v2692 = vand.u32 %v2073, 2147483648
      %v2693 = vsel %vm2691, %v2692, %v2690
      %v2694 = vrsqrt.pop %v2074
      %v2695 = vmul.f32 %v2074, %v2694
      %vm2696 = vcmp.eq.f32.partialorder %v2074, inf
      %v2697 = vsel %vm2696, %v2074, %v2695
      %vm2698 = vcmp.eq.f32.partialorder %v2074, 0.0
      %v2699 = vand.u32 %v2074, 2147483648
      %v2700 = vsel %vm2698, %v2699, %v2697
      %v2701 = vrsqrt.pop %v2075
      %v2702 = vmul.f32 %v2075, %v2701
      %vm2703 = vcmp.eq.f32.partialorder %v2075, inf
      %v2704 = vsel %vm2703, %v2075, %v2702
      %vm2705 = vcmp.eq.f32.partialorder %v2075, 0.0
      %v2706 = vand.u32 %v2075, 2147483648
      %v2707 = vsel %vm2705, %v2706, %v2704
      %v2708 = vrsqrt.pop %v2076
      %v2709 = vmul.f32 %v2076, %v2708
      %vm2710 = vcmp.eq.f32.partialorder %v2076, inf
      %v2711 = vsel %vm2710, %v2076, %v2709
      %vm2712 = vcmp.eq.f32.partialorder %v2076, 0.0
      %v2713 = vand.u32 %v2076, 2147483648
      %v2714 = vsel %vm2712, %v2713, %v2711
      %v2715 = vrsqrt.pop %v2077
      %v2716 = vmul.f32 %v2077, %v2715
      %vm2717 = vcmp.eq.f32.partialorder %v2077, inf
      %v2718 = vsel %vm2717, %v2077, %v2716
      %vm2719 = vcmp.eq.f32.partialorder %v2077, 0.0
      %v2720 = vand.u32 %v2077, 2147483648
      %v2721 = vsel %vm2719, %v2720, %v2718
      %v2722 = vrsqrt.pop %v2078
      %v2723 = vmul.f32 %v2078, %v2722
      %vm2724 = vcmp.eq.f32.partialorder %v2078, inf
      %v2725 = vsel %vm2724, %v2078, %v2723
      %vm2726 = vcmp.eq.f32.partialorder %v2078, 0.0
      %v2727 = vand.u32 %v2078, 2147483648
      %v2728 = vsel %vm2726, %v2727, %v2725
      %v2729 = vrsqrt.pop %v2079
      %v2730 = vmul.f32 %v2079, %v2729
      %vm2731 = vcmp.eq.f32.partialorder %v2079, inf
      %v2732 = vsel %vm2731, %v2079, %v2730
      %vm2733 = vcmp.eq.f32.partialorder %v2079, 0.0
      %v2734 = vand.u32 %v2079, 2147483648
      %v2735 = vsel %vm2733, %v2734, %v2732
      %v2736 = vrsqrt.pop %v2080
      %v2737 = vmul.f32 %v2080, %v2736
      %vm2738 = vcmp.eq.f32.partialorder %v2080, inf
      %v2739 = vsel %vm2738, %v2080, %v2737
      %vm2740 = vcmp.eq.f32.partialorder %v2080, 0.0
      %v2741 = vand.u32 %v2080, 2147483648
      %v2742 = vsel %vm2740, %v2741, %v2739
      %v2743 = vrsqrt.pop %v2081
      %v2744 = vmul.f32 %v2081, %v2743
      %vm2745 = vcmp.eq.f32.partialorder %v2081, inf
      %v2746 = vsel %vm2745, %v2081, %v2744
      %vm2747 = vcmp.eq.f32.partialorder %v2081, 0.0
      %v2748 = vand.u32 %v2081, 2147483648
      %v2749 = vsel %vm2747, %v2748, %v2746
      %v2750 = vrsqrt.pop %v2082
      %v2751 = vmul.f32 %v2082, %v2750
      %vm2752 = vcmp.eq.f32.partialorder %v2082, inf
      %v2753 = vsel %vm2752, %v2082, %v2751
      %vm2754 = vcmp.eq.f32.partialorder %v2082, 0.0
      %v2755 = vand.u32 %v2082, 2147483648
      %v2756 = vsel %vm2754, %v2755, %v2753
      %v2757 = vrsqrt.pop %v2083
      %v2758 = vmul.f32 %v2083, %v2757
      %vm2759 = vcmp.eq.f32.partialorder %v2083, inf
      %v2760 = vsel %vm2759, %v2083, %v2758
      %vm2761 = vcmp.eq.f32.partialorder %v2083, 0.0
      %v2762 = vand.u32 %v2083, 2147483648
      %v2763 = vsel %vm2761, %v2762, %v2760
      %v2764 = vrsqrt.pop %v2084
      %v2765 = vmul.f32 %v2084, %v2764
      %vm2766 = vcmp.eq.f32.partialorder %v2084, inf
      %v2767 = vsel %vm2766, %v2084, %v2765
      %vm2768 = vcmp.eq.f32.partialorder %v2084, 0.0
      %v2769 = vand.u32 %v2084, 2147483648
      %v2770 = vsel %vm2768, %v2769, %v2767
      %v2771 = vrsqrt.pop %v2085
      %v2772 = vmul.f32 %v2085, %v2771
      %vm2773 = vcmp.eq.f32.partialorder %v2085, inf
      %v2774 = vsel %vm2773, %v2085, %v2772
      %vm2775 = vcmp.eq.f32.partialorder %v2085, 0.0
      %v2776 = vand.u32 %v2085, 2147483648
      %v2777 = vsel %vm2775, %v2776, %v2774
      %v2778 = vrsqrt.pop %v2086
      %v2779 = vmul.f32 %v2086, %v2778
      %vm2780 = vcmp.eq.f32.partialorder %v2086, inf
      %v2781 = vsel %vm2780, %v2086, %v2779
      %vm2782 = vcmp.eq.f32.partialorder %v2086, 0.0
      %v2783 = vand.u32 %v2086, 2147483648
      %v2784 = vsel %vm2782, %v2783, %v2781
      %v2785 = vrsqrt.pop %v2087
      %v2786 = vmul.f32 %v2087, %v2785
      %vm2787 = vcmp.eq.f32.partialorder %v2087, inf
      %v2788 = vsel %vm2787, %v2087, %v2786
      %vm2789 = vcmp.eq.f32.partialorder %v2087, 0.0
      %v2790 = vand.u32 %v2087, 2147483648
      %v2791 = vsel %vm2789, %v2790, %v2788
      %v2792 = vsub.f32 %v2126, %v2350
      %v2793 = vsub.f32 %v2133, %v2357
      %v2794 = vsub.f32 %v2140, %v2364
      %v2795 = vsub.f32 %v2147, %v2371
      %v2796 = vsub.f32 %v2154, %v2378
      %v2797 = vsub.f32 %v2161, %v2385
      %v2798 = vsub.f32 %v2168, %v2392
      %v2799 = vsub.f32 %v2175, %v2399
      %v2800 = vsub.f32 %v2182, %v2406
      %v2801 = vsub.f32 %v2189, %v2413
      %v2802 = vsub.f32 %v2196, %v2420
      %v2803 = vsub.f32 %v2203, %v2427
      %v2804 = vsub.f32 %v2210, %v2434
      %v2805 = vsub.f32 %v2217, %v2441
      %v2806 = vsub.f32 %v2224, %v2448
      %v2807 = vsub.f32 %v2231, %v2455
      %v2808 = vsub.f32 %v2238, %v2462
      %v2809 = vsub.f32 %v2245, %v2469
      %v2810 = vsub.f32 %v2252, %v2476
      %v2811 = vsub.f32 %v2259, %v2483
      %v2812 = vsub.f32 %v2266, %v2490
      %v2813 = vsub.f32 %v2273, %v2497
      %v2814 = vsub.f32 %v2280, %v2504
      %v2815 = vsub.f32 %v2287, %v2511
      %v2816 = vsub.f32 %v2294, %v2518
      %v2817 = vsub.f32 %v2301, %v2525
      %v2818 = vsub.f32 %v2308, %v2532
      %v2819 = vsub.f32 %v2315, %v2539
      %v2820 = vsub.f32 %v2322, %v2546
      %v2821 = vsub.f32 %v2329, %v2553
      %v2822 = vsub.f32 %v2336, %v2560
      %v2823 = vsub.f32 %v2343, %v2567
      %v2824 = vmul.f32 %v2792, 1.442695
      %v2825 = vpow.pop %v2824
      %v2826 = vmul.f32 %v2793, 1.442695
      %v2827 = vpow.pop %v2826
      %v2828 = vmul.f32 %v2794, 1.442695
      %v2829 = vpow.pop %v2828
      %v2830 = vmul.f32 %v2795, 1.442695
      %v2831 = vpow.pop %v2830
      %v2832 = vmul.f32 %v2796, 1.442695
      %v2833 = vpow.pop %v2832
      %v2834 = vmul.f32 %v2797, 1.442695
      %v2835 = vpow.pop %v2834
      %v2836 = vmul.f32 %v2798, 1.442695
      %v2837 = vpow.pop %v2836
      %v2838 = vmul.f32 %v2799, 1.442695
      %v2839 = vpow.pop %v2838
      %v2840 = vmul.f32 %v2800, 1.442695
      %v2841 = vpow.pop %v2840
      %v2842 = vmul.f32 %v2801, 1.442695
      %v2843 = vpow.pop %v2842
      %v2844 = vmul.f32 %v2802, 1.442695
      %v2845 = vpow.pop %v2844
      %v2846 = vmul.f32 %v2803, 1.442695
      %v2847 = vpow.pop %v2846
      %v2848 = vmul.f32 %v2804, 1.442695
      %v2849 = vpow.pop %v2848
      %v2850 = vmul.f32 %v2805, 1.442695
      %v2851 = vpow.pop %v2850
      %v2852 = vmul.f32 %v2806, 1.442695
      %v2853 = vpow.pop %v2852
      %v2854 = vmul.f32 %v2807, 1.442695
      %v2855 = vpow.pop %v2854
      %v2856 = vmul.f32 %v2808, 1.442695
      %v2857 = vpow.pop %v2856
      %v2858 = vmul.f32 %v2809, 1.442695
      %v2859 = vpow.pop %v2858
      %v2860 = vmul.f32 %v2810, 1.442695
      %v2861 = vpow.pop %v2860
      %v2862 = vmul.f32 %v2811, 1.442695
      %v2863 = vpow.pop %v2862
      %v2864 = vmul.f32 %v2812, 1.442695
      %v2865 = vpow.pop %v2864
      %v2866 = vmul.f32 %v2813, 1.442695
      %v2867 = vpow.pop %v2866
      %v2868 = vmul.f32 %v2814, 1.442695
      %v2869 = vpow.pop %v2868
      %v2870 = vmul.f32 %v2815, 1.442695
      %v2871 = vpow.pop %v2870
      %v2872 = vmul.f32 %v2816, 1.442695
      %v2873 = vpow.pop %v2872
      %v2874 = vmul.f32 %v2817, 1.442695
      %v2875 = vpow.pop %v2874
      %v2876 = vmul.f32 %v2818, 1.442695
      %v2877 = vpow.pop %v2876
      %v2878 = vmul.f32 %v2819, 1.442695
      %v2879 = vpow.pop %v2878
      %v2880 = vmul.f32 %v2820, 1.442695
      %v2881 = vpow.pop %v2880
      %v2882 = vmul.f32 %v2821, 1.442695
      %v2883 = vpow.pop %v2882
      %v2884 = vmul.f32 %v2822, 1.442695
      %v2885 = vpow.pop %v2884
      %v2886 = vmul.f32 %v2823, 1.442695
      %v2887 = vpow.pop %v2886
      %v2888 = vadd.f32 %v2825, 1.0
      %v2889 = vadd.f32 %v2827, 1.0
      %v2890 = vadd.f32 %v2829, 1.0
      %v2891 = vadd.f32 %v2831, 1.0
      %v2892 = vadd.f32 %v2833, 1.0
      %v2893 = vadd.f32 %v2835, 1.0
      %v2894 = vadd.f32 %v2837, 1.0
      %v2895 = vadd.f32 %v2839, 1.0
      %v2896 = vadd.f32 %v2841, 1.0
      %v2897 = vadd.f32 %v2843, 1.0
      %v2898 = vadd.f32 %v2845, 1.0
      %v2899 = vadd.f32 %v2847, 1.0
      %v2900 = vadd.f32 %v2849, 1.0
      %v2901 = vadd.f32 %v2851, 1.0
      %v2902 = vadd.f32 %v2853, 1.0
      %v2903 = vadd.f32 %v2855, 1.0
      %v2904 = vadd.f32 %v2857, 1.0
      %v2905 = vadd.f32 %v2859, 1.0
      %v2906 = vadd.f32 %v2861, 1.0
      %v2907 = vadd.f32 %v2863, 1.0
      %v2908 = vadd.f32 %v2865, 1.0
      %v2909 = vadd.f32 %v2867, 1.0
      %v2910 = vadd.f32 %v2869, 1.0
      %v2911 = vadd.f32 %v2871, 1.0
      %v2912 = vadd.f32 %v2873, 1.0
      %v2913 = vadd.f32 %v2875, 1.0
      %v2914 = vadd.f32 %v2877, 1.0
      %v2915 = vadd.f32 %v2879, 1.0
      %v2916 = vadd.f32 %v2881, 1.0
      %v2917 = vadd.f32 %v2883, 1.0
      %v2918 = vadd.f32 %v2885, 1.0
      %v2919 = vadd.f32 %v2887, 1.0
      %v2920 = vsub.f32 %v2126, %v2574
      %v2921 = vsub.f32 %v2133, %v2581
      %v2922 = vsub.f32 %v2140, %v2588
      %v2923 = vsub.f32 %v2147, %v2595
      %v2924 = vsub.f32 %v2154, %v2602
      %v2925 = vsub.f32 %v2161, %v2609
      %v2926 = vsub.f32 %v2168, %v2616
      %v2927 = vsub.f32 %v2175, %v2623
      %v2928 = vsub.f32 %v2182, %v2630
      %v2929 = vsub.f32 %v2189, %v2637
      %v2930 = vsub.f32 %v2196, %v2644
      %v2931 = vsub.f32 %v2203, %v2651
      %v2932 = vsub.f32 %v2210, %v2658
      %v2933 = vsub.f32 %v2217, %v2665
      %v2934 = vsub.f32 %v2224, %v2672
      %v2935 = vsub.f32 %v2231, %v2679
      %v2936 = vsub.f32 %v2238, %v2686
      %v2937 = vsub.f32 %v2245, %v2693
      %v2938 = vsub.f32 %v2252, %v2700
      %v2939 = vsub.f32 %v2259, %v2707
      %v2940 = vsub.f32 %v2266, %v2714
      %v2941 = vsub.f32 %v2273, %v2721
      %v2942 = vsub.f32 %v2280, %v2728
      %v2943 = vsub.f32 %v2287, %v2735
      %v2944 = vsub.f32 %v2294, %v2742
      %v2945 = vsub.f32 %v2301, %v2749
      %v2946 = vsub.f32 %v2308, %v2756
      %v2947 = vsub.f32 %v2315, %v2763
      %v2948 = vsub.f32 %v2322, %v2770
      %v2949 = vsub.f32 %v2329, %v2777
      %v2950 = vsub.f32 %v2336, %v2784
      %v2951 = vsub.f32 %v2343, %v2791
      %v2952 = vmul.f32 %v2920, 1.442695
      %v2953 = vpow.pop %v2952
      %v2954 = vmul.f32 %v2921, 1.442695
      %v2955 = vpow.pop %v2954
      %v2956 = vmul.f32 %v2922, 1.442695
      %v2957 = vpow.pop %v2956
      %v2958 = vmul.f32 %v2923, 1.442695
      %v2959 = vpow.pop %v2958
      %v2960 = vmul.f32 %v2924, 1.442695
      %v2961 = vpow.pop %v2960
      %v2962 = vmul.f32 %v2925, 1.442695
      %v2963 = vpow.pop %v2962
      %v2964 = vmul.f32 %v2926, 1.442695
      %v2965 = vpow.pop %v2964
      %v2966 = vmul.f32 %v2927, 1.442695
      %v2967 = vpow.pop %v2966
      %v2968 = vmul.f32 %v2928, 1.442695
      %v2969 = vpow.pop %v2968
      %v2970 = vmul.f32 %v2929, 1.442695
      %v2971 = vpow.pop %v2970
      %v2972 = vmul.f32 %v2930, 1.442695
      %v2973 = vpow.pop %v2972
      %v2974 = vmul.f32 %v2931, 1.442695
      %v2975 = vpow.pop %v2974
      %v2976 = vmul.f32 %v2932, 1.442695
      %v2977 = vpow.pop %v2976
      %v2978 = vmul.f32 %v2933, 1.442695
      %v2979 = vpow.pop %v2978
      %v2980 = vmul.f32 %v2934, 1.442695
      %v2981 = vpow.pop %v2980
      %v2982 = vmul.f32 %v2935, 1.442695
      %v2983 = vpow.pop %v2982
      %v2984 = vmul.f32 %v2936, 1.442695
      %v2985 = vpow.pop %v2984
      %v2986 = vmul.f32 %v2937, 1.442695
      %v2987 = vpow.pop %v2986
      %v2988 = vmul.f32 %v2938, 1.442695
      %v2989 = vpow.pop %v2988
      %v2990 = vmul.f32 %v2939, 1.442695
      %v2991 = vpow.pop %v2990
      %v2992 = vmul.f32 %v2940, 1.442695
      %v2993 = vpow.pop %v2992
      %v2994 = vmul.f32 %v2941, 1.442695
      %v2995 = vpow.pop %v2994
      %v2996 = vmul.f32 %v2942, 1.442695
      %v2997 = vpow.pop %v2996
      %v2998 = vmul.f32 %v2943, 1.442695
      %v2999 = vpow.pop %v2998
      %v3000 = vmul.f32 %v2944, 1.442695
      %v3001 = vpow.pop %v3000
      %v3002 = vmul.f32 %v2945, 1.442695
      %v3003 = vpow.pop %v3002
      %v3004 = vmul.f32 %v2946, 1.442695
      %v3005 = vpow.pop %v3004
      %v3006 = vmul.f32 %v2947, 1.442695
      %v3007 = vpow.pop %v3006
      %v3008 = vmul.f32 %v2948, 1.442695
      %v3009 = vpow.pop %v3008
      %v3010 = vmul.f32 %v2949, 1.442695
      %v3011 = vpow.pop %v3010
      %v3012 = vmul.f32 %v2950, 1.442695
      %v3013 = vpow.pop %v3012
      %v3014 = vmul.f32 %v2951, 1.442695
      %v3015 = vpow.pop %v3014
      %v3016 = vadd.f32 %v2888, %v2953
      %v3017 = vadd.f32 %v2889, %v2955
      %v3018 = vadd.f32 %v2890, %v2957
      %v3019 = vadd.f32 %v2891, %v2959
      %v3020 = vadd.f32 %v2892, %v2961
      %v3021 = vadd.f32 %v2893, %v2963
      %v3022 = vadd.f32 %v2894, %v2965
      %v3023 = vadd.f32 %v2895, %v2967
      %v3024 = vadd.f32 %v2896, %v2969
      %v3025 = vadd.f32 %v2897, %v2971
      %v3026 = vadd.f32 %v2898, %v2973
      %v3027 = vadd.f32 %v2899, %v2975
      %v3028 = vadd.f32 %v2900, %v2977
      %v3029 = vadd.f32 %v2901, %v2979
      %v3030 = vadd.f32 %v2902, %v2981
      %v3031 = vadd.f32 %v2903, %v2983
      %v3032 = vadd.f32 %v2904, %v2985
      %v3033 = vadd.f32 %v2905, %v2987
      %v3034 = vadd.f32 %v2906, %v2989
      %v3035 = vadd.f32 %v2907, %v2991
      %v3036 = vadd.f32 %v2908, %v2993
      %v3037 = vadd.f32 %v2909, %v2995
      %v3038 = vadd.f32 %v2910, %v2997
      %v3039 = vadd.f32 %v2911, %v2999
      %v3040 = vadd.f32 %v2912, %v3001
      %v3041 = vadd.f32 %v2913, %v3003
      %v3042 = vadd.f32 %v2914, %v3005
      %v3043 = vadd.f32 %v2915, %v3007
      %v3044 = vadd.f32 %v2916, %v3009
      %v3045 = vadd.f32 %v2917, %v3011
      %v3046 = vadd.f32 %v2918, %v3013
      %v3047 = vadd.f32 %v2919, %v3015
      %v3048 = vrcp.pop %v3016
      %v3049 = vrcp.pop %v3017
      %v3050 = vrcp.pop %v3018
      %v3051 = vrcp.pop %v3019
      %v3052 = vrcp.pop %v3020
      %v3053 = vrcp.pop %v3021
      %v3054 = vrcp.pop %v3022
      %v3055 = vrcp.pop %v3023
      %v3056 = vrcp.pop %v3024
      %v3057 = vrcp.pop %v3025
      %v3058 = vrcp.pop %v3026
      %v3059 = vrcp.pop %v3027
      %v3060 = vrcp.pop %v3028
      %v3061 = vrcp.pop %v3029
      %v3062 = vrcp.pop %v3030
      %v3063 = vrcp.pop %v3031
      %v3064 = vrcp.pop %v3032
      %v3065 = vrcp.pop %v3033
      %v3066 = vrcp.pop %v3034
      %v3067 = vrcp.pop %v3035
      %v3068 = vrcp.pop %v3036
      %v3069 = vrcp.pop %v3037
      %v3070 = vrcp.pop %v3038
      %v3071 = vrcp.pop %v3039
      %v3072 = vrcp.pop %v3040
      %v3073 = vrcp.pop %v3041
      %v3074 = vrcp.pop %v3042
      %v3075 = vrcp.pop %v3043
      %v3076 = vrcp.pop %v3044
      %v3077 = vrcp.pop %v3045
      %v3078 = vrcp.pop %v3046
      %v3079 = vrcp.pop %v3047
      %v3080 = vmul.f32 %v3048, %v2126
      %v3081 = vmul.f32 %v3049, %v2133
      %v3082 = vmul.f32 %v3050, %v2140
      %v3083 = vmul.f32 %v3051, %v2147
      %v3084 = vmul.f32 %v3052, %v2154
      %v3085 = vmul.f32 %v3053, %v2161
      %v3086 = vmul.f32 %v3054, %v2168
      %v3087 = vmul.f32 %v3055, %v2175
      %v3088 = vmul.f32 %v3056, %v2182
      %v3089 = vmul.f32 %v3057, %v2189
      %v3090 = vmul.f32 %v3058, %v2196
      %v3091 = vmul.f32 %v3059, %v2203
      %v3092 = vmul.f32 %v3060, %v2210
      %v3093 = vmul.f32 %v3061, %v2217
      %v3094 = vmul.f32 %v3062, %v2224
      %v3095 = vmul.f32 %v3063, %v2231
      %v3096 = vmul.f32 %v3064, %v2238
      %v3097 = vmul.f32 %v3065, %v2245
      %v3098 = vmul.f32 %v3066, %v2252
      %v3099 = vmul.f32 %v3067, %v2259
      %v3100 = vmul.f32 %v3068, %v2266
      %v3101 = vmul.f32 %v3069, %v2273
      %v3102 = vmul.f32 %v3070, %v2280
      %v3103 = vmul.f32 %v3071, %v2287
      %v3104 = vmul.f32 %v3072, %v2294
      %v3105 = vmul.f32 %v3073, %v2301
      %v3106 = vmul.f32 %v3074, %v2308
      %v3107 = vmul.f32 %v3075, %v2315
      %v3108 = vmul.f32 %v3076, %v2322
      %v3109 = vmul.f32 %v3077, %v2329
      %v3110 = vmul.f32 %v3078, %v2336
      %v3111 = vmul.f32 %v3079, %v2343
      %vm3112 = vcmask 7168
      %3113 = vst.msk [vmem:[%s172] sm:$0xff] %vm3112, %v3080
      %3114 = vst.msk [vmem:[%s172 + $0x8] sm:$0xff] %vm3112, %v3081
      %3115 = vst.msk [vmem:[%s172 + $0x10] sm:$0xff] %vm3112, %v3082
      %3116 = vst.msk [vmem:[%s172 + $0x18] sm:$0xff] %vm3112, %v3083
      %3117 = vst.msk [vmem:[%s172 + $0x20] sm:$0xff] %vm3112, %v3084
      %3118 = vst.msk [vmem:[%s172 + $0x28] sm:$0xff] %vm3112, %v3085
      %3119 = vst.msk [vmem:[%s172 + $0x30] sm:$0xff] %vm3112, %v3086
      %3120 = vst.msk [vmem:[%s172 + $0x38] sm:$0xff] %vm3112, %v3087
      %3121 = vst.msk [vmem:[%s172 + $0x40] sm:$0xff] %vm3112, %v3088
      %3122 = vst.msk [vmem:[%s172 + $0x48] sm:$0xff] %vm3112, %v3089
      %3123 = vst.msk [vmem:[%s172 + $0x50] sm:$0xff] %vm3112, %v3090
      %3124 = vst.msk [vmem:[%s172 + $0x58] sm:$0xff] %vm3112, %v3091
      %3125 = vst.msk [vmem:[%s172 + $0x60] sm:$0xff] %vm3112, %v3092
      %3126 = vst.msk [vmem:[%s172 + $0x68] sm:$0xff] %vm3112, %v3093
      %3127 = vst.msk [vmem:[%s172 + $0x70] sm:$0xff] %vm3112, %v3094
      %3128 = vst.msk [vmem:[%s172 + $0x78] sm:$0xff] %vm3112, %v3095
      %3129 = vst.msk [vmem:[%s172 + $0x80] sm:$0xff] %vm3112, %v3096
      %3130 = vst.msk [vmem:[%s172 + $0x88] sm:$0xff] %vm3112, %v3097
      %3131 = vst.msk [vmem:[%s172 + $0x90] sm:$0xff] %vm3112, %v3098
      %3132 = vst.msk [vmem:[%s172 + $0x98] sm:$0xff] %vm3112, %v3099
      %3133 = vst.msk [vmem:[%s172 + $0xa0] sm:$0xff] %vm3112, %v3100
      %3134 = vst.msk [vmem:[%s172 + $0xa8] sm:$0xff] %vm3112, %v3101
      %3135 = vst.msk [vmem:[%s172 + $0xb0] sm:$0xff] %vm3112, %v3102
      %3136 = vst.msk [vmem:[%s172 + $0xb8] sm:$0xff] %vm3112, %v3103
      %3137 = vst.msk [vmem:[%s172 + $0xc0] sm:$0xff] %vm3112, %v3104
      %3138 = vst.msk [vmem:[%s172 + $0xc8] sm:$0xff] %vm3112, %v3105
      %3139 = vst.msk [vmem:[%s172 + $0xd0] sm:$0xff] %vm3112, %v3106
      %3140 = vst.msk [vmem:[%s172 + $0xd8] sm:$0xff] %vm3112, %v3107
      %3141 = vst.msk [vmem:[%s172 + $0xe0] sm:$0xff] %vm3112, %v3108
      %3142 = vst.msk [vmem:[%s172 + $0xe8] sm:$0xff] %vm3112, %v3109
      %3143 = vst.msk [vmem:[%s172 + $0xf0] sm:$0xff] %vm3112, %v3110
      %3144 = vst.msk [vmem:[%s172 + $0xf8] sm:$0xff] %vm3112, %v3111
      %s3145 = smul.u32 32, %s14
      %p3146 = scmp.lt.s32.totalorder %s3145, 63
      %s3147 = scalar_select %p3146, %s3145, 63
      %s3148 = smul.addr %s3147, 8
      %s3149 = scalar_lea.vmem %s3, %s3148
      // Predicated region
      $region33: #{tpu_custom_call.1} parent=31 // pred_check
        %p3150 = pneg %p100
      $region34: #{tpu_custom_call.1} parent=31 // pred_check_branch
        %3152 = sbr.rel (%p3150) target = $region36
      $region35: #{tpu_custom_call.1} parent=31 // pred_region
        %s3153 = smul.u32 32, %s14
      $region36: #{tpu_custom_call.1} parent=31 // pred_fallthru
        _
    $region32: #{tpu_custom_call.1} parent=5 // pred_fallthru
      _
    %p3154 = scmp.le.s32.totalorder 2, %s9
    // Predicated region
    $region37: #{tpu_custom_call.1} parent=5 // pred_check
      %p3155 = pneg %p3154
    $region38: #{tpu_custom_call.1} parent=5 // pred_check_branch
      %3157 = sbr.rel (%p3155) target = $region40
    $region39: #{tpu_custom_call.1} parent=5 // pred_region
      %s3158 = ssub.s32 %s9, 2
      // Predicated region
      $region41: #{tpu_custom_call.1} parent=39 // pred_check
        %p3159 = pneg %p106
      $region42: #{tpu_custom_call.1} parent=39 // pred_check_branch
        %3161 = sbr.rel (%p3159) target = $region44
      $region43: #{tpu_custom_call.1} parent=39 // pred_region
        %s3162 = smul.u32 32, %s15
        %p3163 = scmp.lt.s32.totalorder %s3162, 63
        %s3164 = scalar_select %p3163, %s3162, 63
        %s3165 = smul.addr %s3164, 8
        %s3166 = scalar_lea.vmem %s3, %s3165
      $region44: #{tpu_custom_call.1} parent=39 // pred_fallthru
        _
    $region40: #{tpu_custom_call.1} parent=5 // pred_fallthru
      _
  $region6: #{tpu_custom_call.1} parent=0 // loop_footer
    %s13 = sadd.s32 1, %s9
  $region7: #{tpu_custom_call.1} parent=0 // loop_footer_branch
    %8 = sbr.rel target = $region3
  $region8: #{tpu_custom_call.1} parent=0 // loop_exit
    _

</llo_original>
